<compile_context>
chip_gen: v7x
topology: tpu7x:2x2x1
jax: 0.10.0
libtpu: 0.0.40
codegen_flags: <defaults>
</compile_context>

<pallas_src>
import functools

import jax
import jax.numpy as jnp
from jax import lax
from jax.experimental import pallas as pl
from jax.experimental.pallas import tpu as pltpu


MXU_DTYPE = jnp.bfloat16  # MXU operand dtype; accumulation stays f32.


# ----------------------------------------------------------------------------
# In-kernel circular 3x3 taps on a channel-major (C, H*W) array.
# ----------------------------------------------------------------------------
def _circ_taps(z, img_h, img_w, col_first, col_last):
    """Return 9 taps: tap[t][c, i*W+j] = z[c, ((i+ky-1)%H)*W + (j+kx-1)%W],
    t = ky*3 + kx — exactly Conv2d(3x3, padding='same', padding_mode='circular').

    Row (H) shifts are exact flat rolls by +-W on the lane axis; column (W)
    shifts are a flat roll by +-1 with a select fixing the row-boundary wrap.
    """
    z_right = jnp.where(col_first, jnp.roll(z, 1 - img_w, axis=-1),
                        jnp.roll(z, 1, axis=-1))                 # kx = 0
    z_left = jnp.where(col_last, jnp.roll(z, img_w - 1, axis=-1),
                       jnp.roll(z, -1, axis=-1))                 # kx = 2
    cols = (z_right, z, z_left)
    taps = []
    for ky in range(3):
        s = (1 - ky) * img_w                                     # exact row shift
        for kx in range(3):
            c = cols[kx]
            taps.append(c if s == 0 else jnp.roll(c, s, axis=-1))
    return taps


# ----------------------------------------------------------------------------
# Fused kernel: conv(3x3 circ) -> concat_elu -> conv1(1x1) -> LeakyReLU
#             -> conv2(3x3 circ) -> gate -> conv3(1x1) -> tanh
# ----------------------------------------------------------------------------
def _gated_conv2_kernel(x_ref, w0_ref, b0_ref, w1_ref, b1_ref, w2_ref, b2_ref,
                        w3_ref, b3_ref, o_ref, im2col_ref, *, img_h, img_w):
    # x_ref     : (1, 1, HW)        single-channel input, HW on lanes
    # w0_ref    : (C0, 9)     f32   3x3 conv taps (Cin=1), t = ky*3+kx
    # b0_ref    : (C0, 1)     f32
    # w1_ref    : (W, W)      bf16  conv1 1x1, rows = out channel
    # b1_ref    : (W, 1)      f32
    # w2_ref    : (2W, 9W)    bf16  conv2 im2col matrix, K index = t*W + cin
    # b2_ref    : (2W, 1)     f32
    # w3_ref    : (Cout, W)   bf16  conv3 1x1
    # b3_ref    : (Cout, 1)   f32
    # o_ref     : (1, Cout, HW)     lane-dense output
    # im2col_ref: (9W, HW)    bf16  VMEM scratch for conv2's im2col
    hw = img_h * img_w
    cw = w1_ref.shape[0]
    mxu_dt = w2_ref.dtype

    col = lax.broadcasted_iota(jnp.int32, (1, hw), 1) % img_w
    taps = functools.partial(_circ_taps, img_h=img_h, img_w=img_w,
                             col_first=(col == 0), col_last=(col == img_w - 1))

    # ---- Stage 1: 3x3 circular conv (Cin=1) as 9 VPU broadcast-FMAs ----
    x = x_ref[0]                                                   # (1, HW) f32
    y = jnp.broadcast_to(b0_ref[...], (w0_ref.shape[0], hw))
    for t, tap in enumerate(taps(x)):
        y = y + w0_ref[:, t:t + 1] * tap                           # (C0, HW)

    # concat_elu with a single transcendental: e = exp(-|y|).
    e = jnp.exp(-jnp.abs(y))
    elu_p = jnp.where(y > 0, y, e - 1.0)                           # elu(y)
    elu_n = jnp.where(y > 0, e - 1.0, -y)                          # elu(-y)
    eluc = jnp.concatenate([elu_p, elu_n], axis=0)                 # (W, HW)

    # conv1 (1x1) as ONE dot + LeakyReLU(0.01).
    z = (jnp.dot(w1_ref[...], eluc.astype(mxu_dt),
                 preferred_element_type=jnp.float32) + b1_ref[...])  # (W, HW)
    z = jnp.where(z > 0, z, 0.01 * z)

    # ---- Stage 2: channel-major im2col (32-row sublane slabs, lane-dense) ----
    for t, tap in enumerate(taps(z)):
        im2col_ref[t * cw:(t + 1) * cw, :] = tap.astype(mxu_dt)

    # conv2 as ONE matmul: (2W, 9W) @ (9W, HW).
    acc = (jnp.dot(w2_ref[...], im2col_ref[...],
                   preferred_element_type=jnp.float32) + b2_ref[...])  # (2W, HW)

    # Gate (row slices), conv3 (plain dot, no transpose), tanh.
    g = acc[:cw, :] * jax.nn.sigmoid(acc[cw:, :])                  # (W, HW)
    out = (jnp.dot(w3_ref[...], g.astype(mxu_dt),
                   preferred_element_type=jnp.float32) + b3_ref[...])  # (Cout, HW)
    o_ref[0] = jnp.tanh(out)


# ----------------------------------------------------------------------------
# Parameters (deterministic synthetic init, torch OIHW layout) + conversion.
# ----------------------------------------------------------------------------
def init_params(key, width, out_channels):
    ks = jax.random.split(key, 8)
    c0 = width // 2

    def nrm(k, shape, scale):
        return scale * jax.random.normal(k, shape, dtype=jnp.float32)

    return {
        "w0": nrm(ks[0], (c0, 1, 3, 3), 0.3),                 # conv  (O,I,kH,kW)
        "b0": nrm(ks[1], (c0,), 0.1),
        "w1": nrm(ks[2], (width, width, 1, 1), 0.2),          # conv1 1x1
        "b1": nrm(ks[3], (width,), 0.1),
        "w2": nrm(ks[4], (2 * width, width, 3, 3), 0.1),      # conv2 3x3
        "b2": nrm(ks[5], (2 * width,), 0.1),
        "w3": nrm(ks[6], (out_channels, width, 1, 1), 0.2),   # conv3 1x1
        "b3": nrm(ks[7], (out_channels,), 0.1),
    }


def _prepare_kernel_params(p, width, mxu_dtype):
    c0 = width // 2
    # conv (O=C0, I=1, 3, 3) -> (C0, 9), tap index t = ky*3+kx.  Kept f32 (VPU path).
    w0 = p["w0"].reshape(c0, 9)
    # conv1 1x1 (O, I): channel-major dot needs (O, I) directly.
    w1 = p["w1"][:, :, 0, 0].astype(mxu_dtype)                 # (W, W)
    # conv2 (O=2W, I=W, 3, 3) -> (2W, 9W) with K index = (ky*3+kx)*W + cin.
    w2 = jnp.transpose(p["w2"], (0, 2, 3, 1)).reshape(
        2 * width, 9 * width).astype(mxu_dtype)
    # conv3 1x1 (O=Cout, I=W).
    w3 = p["w3"][:, :, 0, 0].astype(mxu_dtype)                 # (Cout, W)
    return {
        "w0": w0, "b0": p["b0"].reshape(-1, 1),
        "w1": w1, "b1": p["b1"].reshape(-1, 1),
        "w2": w2, "b2": p["b2"].reshape(-1, 1),
        "w3": w3, "b3": p["b3"].reshape(-1, 1),
    }


# ----------------------------------------------------------------------------
# Forward wrapper
# ----------------------------------------------------------------------------
def gated_conv2_forward(x_nchw, params, width, *, mxu_dtype=MXU_DTYPE):
    """Pallas forward.  x_nchw: (N, 1, H, W) f32 -> (N, out_channels, H, W)."""
    n, cin, img_h, img_w = x_nchw.shape
    assert cin == 1, "GatedConv2.conv has a single input channel"
    hw = img_h * img_w
    assert hw % 128 == 0, "flat H*W must be lane-tile aligned"
    assert width % 16 == 0, "width must keep sublane slabs aligned"

    kp = _prepare_kernel_params(params, width, mxu_dtype)
    cout = kp["w3"].shape[0]
    x_flat = x_nchw.reshape(n, 1, hw)                              # lane-dense input

    kernel = functools.partial(_gated_conv2_kernel, img_h=img_h, img_w=img_w)

    out = pl.pallas_call(
        kernel,
        out_shape=jax.ShapeDtypeStruct((n, cout, hw), jnp.float32),
        grid=(n,),
        in_specs=[
            pl.BlockSpec((1, 1, hw), lambda i: (i, 0, 0)),
            pl.BlockSpec(kp["w0"].shape, lambda i: (0, 0)),
            pl.BlockSpec(kp["b0"].shape, lambda i: (0, 0)),
            pl.BlockSpec(kp["w1"].shape, lambda i: (0, 0)),
            pl.BlockSpec(kp["b1"].shape, lambda i: (0, 0)),
            pl.BlockSpec(kp["w2"].shape, lambda i: (0, 0)),
            pl.BlockSpec(kp["b2"].shape, lambda i: (0, 0)),
            pl.BlockSpec(kp["w3"].shape, lambda i: (0, 0)),
            pl.BlockSpec(kp["b3"].shape, lambda i: (0, 0)),
        ],
        out_specs=pl.BlockSpec((1, cout, hw), lambda i: (i, 0, 0)),
        scratch_shapes=[pltpu.VMEM((9 * width, hw), mxu_dtype)],
        compiler_params=pltpu.CompilerParams(dimension_semantics=("parallel",)),
    )(x_flat, kp["w0"], kp["b0"], kp["w1"], kp["b1"],
      kp["w2"], kp["b2"], kp["w3"], kp["b3"])

    return out.reshape(n, cout, img_h, img_w)                      # already NCHW


# ----------------------------------------------------------------------------
# Pure-JAX/XLA reference (numerical check).
# ----------------------------------------------------------------------------
def reference_forward(x, p):
    dn = ("NCHW", "OIHW", "NCHW")

    def conv3_circ(h, w_, b_):
        hp = jnp.pad(h, ((0, 0), (0, 0), (1, 1), (1, 1)), mode="wrap")
        y = lax.conv_general_dilated(hp, w_, (1, 1), "VALID", dimension_numbers=dn)
        return y + b_[None, :, None, None]

    def conv1x1(h, w_, b_):
        y = lax.conv_general_dilated(h, w_, (1, 1), "VALID", dimension_numbers=dn)
        return y + b_[None, :, None, None]

    y = conv3_circ(x, p["w0"], p["b0"])
    y = jnp.concatenate([y, -y], axis=1)
    y = jnp.where(y > 0, y, jnp.exp(jnp.minimum(y, 0.0)) - 1.0)   # ELU(alpha=1)
    y = conv1x1(y, p["w1"], p["b1"])
    y = jnp.where(y > 0, y, 0.01 * y)                             # LeakyReLU
    y = conv3_circ(y, p["w2"], p["b2"])
    a, b = jnp.split(y, 2, axis=1)
    y = a * jax.nn.sigmoid(b)
    y = conv1x1(y, p["w3"], p["b3"])
    return jnp.tanh(y)


if __name__ == "__main__":
    N, H, W = 2, 16, 16
    WIDTH, OUT_CHANNELS = 32, 4

    key = jax.random.PRNGKey(0)
    kx, kp = jax.random.split(key)
    x = jax.random.normal(kx, (N, 1, H, W), dtype=jnp.float32)
    params = init_params(kp, WIDTH, OUT_CHANNELS)

    out = gated_conv2_forward(x, params, WIDTH)
    out = jax.block_until_ready(out)

    assert out.shape == (N, OUT_CHANNELS, H, W), out.shape
    ref = reference_forward(x, params)
    # bf16 MXU operands (f32 accumulate) -> relaxed tolerance vs the f32 reference.
    err = float(jnp.max(jnp.abs(out - ref)))
    if not bool(jnp.allclose(out, ref, atol=5e-2, rtol=5e-2)):
        raise AssertionError(f"Pallas output does not match reference (max err {err:.3e})")
    print("KERNEL_OK")
</pallas_src>

<mosaic_0001>
module attributes {stable_mosaic.version = 11 : i64} {
  func.func @_gated_conv2_kernel(%arg0: i32, %arg1: memref<1x1x256xf32, #tpu.memory_space<vmem>>, %arg2: memref<16x9xf32, #tpu.memory_space<vmem>>, %arg3: memref<16x1xf32, #tpu.memory_space<vmem>>, %arg4: memref<32x32xbf16, #tpu.memory_space<vmem>>, %arg5: memref<32x1xf32, #tpu.memory_space<vmem>>, %arg6: memref<64x288xbf16, #tpu.memory_space<vmem>>, %arg7: memref<64x1xf32, #tpu.memory_space<vmem>>, %arg8: memref<4x32xbf16, #tpu.memory_space<vmem>>, %arg9: memref<4x1xf32, #tpu.memory_space<vmem>>, %arg10: memref<1x4x256xf32, #tpu.memory_space<vmem>>, %arg11: memref<288x256xbf16, #tpu.memory_space<vmem>>) attributes {dimension_semantics = [#tpu.dimension_semantics<parallel>], iteration_bounds = array<i64: 2>, scalar_prefetch = 0 : i64, scratch_operands = 1 : i64, tpu.core_type = #tpu.core_type<tc>, window_params = [{transform_indices = @transform_0, window_bounds = array<i64: 1, 1, 256>}, {pipeline_mode = #tpu.pipeline_mode<synchronous>, transform_indices = @transform_1, window_bounds = array<i64: 16, 9>}, {pipeline_mode = #tpu.pipeline_mode<synchronous>, transform_indices = @transform_2, window_bounds = array<i64: 16, 1>}, {pipeline_mode = #tpu.pipeline_mode<synchronous>, transform_indices = @transform_3, window_bounds = array<i64: 32, 32>}, {pipeline_mode = #tpu.pipeline_mode<synchronous>, transform_indices = @transform_4, window_bounds = array<i64: 32, 1>}, {pipeline_mode = #tpu.pipeline_mode<synchronous>, transform_indices = @transform_5, window_bounds = array<i64: 64, 288>}, {pipeline_mode = #tpu.pipeline_mode<synchronous>, transform_indices = @transform_6, window_bounds = array<i64: 64, 1>}, {pipeline_mode = #tpu.pipeline_mode<synchronous>, transform_indices = @transform_7, window_bounds = array<i64: 4, 32>}, {pipeline_mode = #tpu.pipeline_mode<synchronous>, transform_indices = @transform_8, window_bounds = array<i64: 4, 1>}, {transform_indices = @transform_9, window_bounds = array<i64: 1, 4, 256>}]} {
    %0 = tpu.iota {dimensions = array<i32: 1>} : vector<1x256xi32>
    %c16_i32 = arith.constant 16 : i32
    %c0_i32 = arith.constant 0 : i32
    %1 = arith.cmpi eq, %c16_i32, %c0_i32 : i32
    %c1_i32 = arith.constant 1 : i32
    %2 = arith.select %1, %c1_i32, %c16_i32 : i32
    %3 = vector.broadcast %2 : i32 to vector<1x256xi32>
    %4 = arith.remsi %0, %3 : vector<1x256xi32>
    %c0_i32_0 = arith.constant 0 : i32
    %5 = vector.broadcast %c0_i32_0 : i32 to vector<1x256xi32>
    %6 = arith.cmpi ne, %4, %5 : vector<1x256xi32>
    %c0_i32_1 = arith.constant 0 : i32
    %7 = vector.broadcast %c0_i32_1 : i32 to vector<1x256xi32>
    %8 = arith.cmpi slt, %4, %7 : vector<1x256xi32>
    %c0_i32_2 = arith.constant 0 : i32
    %9 = arith.cmpi slt, %2, %c0_i32_2 : i32
    %10 = vector.broadcast %9 : i1 to vector<1x256xi1>
    %11 = vector.broadcast %10 : vector<1x256xi1> to vector<1x256xi1>
    %12 = arith.xori %8, %11 : vector<1x256xi1>
    %13 = arith.andi %12, %6 : vector<1x256xi1>
    %14 = vector.broadcast %2 : i32 to vector<1x256xi32>
    %15 = arith.addi %4, %14 : vector<1x256xi32>
    %16 = arith.select %13, %15, %4 : vector<1x256xi1>, vector<1x256xi32>
    %c0_i32_3 = arith.constant 0 : i32
    %17 = vector.broadcast %c0_i32_3 : i32 to vector<1x256xi32>
    %18 = arith.cmpi eq, %16, %17 : vector<1x256xi32>
    %c15_i32 = arith.constant 15 : i32
    %19 = vector.broadcast %c15_i32 : i32 to vector<1x256xi32>
    %20 = arith.cmpi eq, %16, %19 : vector<1x256xi32>
    %c0 = arith.constant 0 : index
    %c0_4 = arith.constant 0 : index
    %c0_5 = arith.constant 0 : index
    %21 = vector.load %arg1[%c0, %c0_4, %c0_5] : memref<1x1x256xf32, #tpu.memory_space<vmem>>, vector<1x1x256xf32>
    %22 = vector.shape_cast %21 : vector<1x1x256xf32> to vector<1x256xf32>
    %c0_6 = arith.constant 0 : index
    %c0_7 = arith.constant 0 : index
    %23 = vector.load %arg3[%c0_6, %c0_7] : memref<16x1xf32, #tpu.memory_space<vmem>>, vector<16x1xf32>
    %24 = vector.shape_cast %23 : vector<16x1xf32> to vector<16x1xf32>
    %25 = vector.broadcast %24 : vector<16x1xf32> to vector<16x256xf32>
    %26 = vector.extract_strided_slice %22 {offsets = [0, 15], sizes = [1, 241], strides = [1, 1]} : vector<1x256xf32> to vector<1x241xf32>
    %27 = vector.extract_strided_slice %22 {offsets = [0, 0], sizes = [1, 15], strides = [1, 1]} : vector<1x256xf32> to vector<1x15xf32>
    %28 = tpu.concatenate %26, %27 in 1 : vector<1x241xf32>, vector<1x15xf32> -> vector<1x256xf32>
    %29 = vector.extract_strided_slice %22 {offsets = [0, 255], sizes = [1, 1], strides = [1, 1]} : vector<1x256xf32> to vector<1x1xf32>
    %30 = vector.extract_strided_slice %22 {offsets = [0, 0], sizes = [1, 255], strides = [1, 1]} : vector<1x256xf32> to vector<1x255xf32>
    %31 = tpu.concatenate %29, %30 in 1 : vector<1x1xf32>, vector<1x255xf32> -> vector<1x256xf32>
    %32 = arith.select %18, %28, %31 : vector<1x256xi1>, vector<1x256xf32>
    %33 = vector.extract_strided_slice %22 {offsets = [0, 241], sizes = [1, 15], strides = [1, 1]} : vector<1x256xf32> to vector<1x15xf32>
    %34 = vector.extract_strided_slice %22 {offsets = [0, 0], sizes = [1, 241], strides = [1, 1]} : vector<1x256xf32> to vector<1x241xf32>
    %35 = tpu.concatenate %33, %34 in 1 : vector<1x15xf32>, vector<1x241xf32> -> vector<1x256xf32>
    %36 = vector.extract_strided_slice %22 {offsets = [0, 1], sizes = [1, 255], strides = [1, 1]} : vector<1x256xf32> to vector<1x255xf32>
    %37 = vector.extract_strided_slice %22 {offsets = [0, 0], sizes = [1, 1], strides = [1, 1]} : vector<1x256xf32> to vector<1x1xf32>
    %38 = tpu.concatenate %36, %37 in 1 : vector<1x255xf32>, vector<1x1xf32> -> vector<1x256xf32>
    %39 = arith.select %20, %35, %38 : vector<1x256xi1>, vector<1x256xf32>
    %40 = vector.extract_strided_slice %32 {offsets = [0, 240], sizes = [1, 16], strides = [1, 1]} : vector<1x256xf32> to vector<1x16xf32>
    %41 = vector.extract_strided_slice %32 {offsets = [0, 0], sizes = [1, 240], strides = [1, 1]} : vector<1x256xf32> to vector<1x240xf32>
    %42 = tpu.concatenate %40, %41 in 1 : vector<1x16xf32>, vector<1x240xf32> -> vector<1x256xf32>
    %43 = vector.extract_strided_slice %22 {offsets = [0, 240], sizes = [1, 16], strides = [1, 1]} : vector<1x256xf32> to vector<1x16xf32>
    %44 = vector.extract_strided_slice %22 {offsets = [0, 0], sizes = [1, 240], strides = [1, 1]} : vector<1x256xf32> to vector<1x240xf32>
    %45 = tpu.concatenate %43, %44 in 1 : vector<1x16xf32>, vector<1x240xf32> -> vector<1x256xf32>
    %46 = vector.extract_strided_slice %39 {offsets = [0, 240], sizes = [1, 16], strides = [1, 1]} : vector<1x256xf32> to vector<1x16xf32>
    %47 = vector.extract_strided_slice %39 {offsets = [0, 0], sizes = [1, 240], strides = [1, 1]} : vector<1x256xf32> to vector<1x240xf32>
    %48 = tpu.concatenate %46, %47 in 1 : vector<1x16xf32>, vector<1x240xf32> -> vector<1x256xf32>
    %49 = vector.extract_strided_slice %32 {offsets = [0, 16], sizes = [1, 240], strides = [1, 1]} : vector<1x256xf32> to vector<1x240xf32>
    %50 = vector.extract_strided_slice %32 {offsets = [0, 0], sizes = [1, 16], strides = [1, 1]} : vector<1x256xf32> to vector<1x16xf32>
    %51 = tpu.concatenate %49, %50 in 1 : vector<1x240xf32>, vector<1x16xf32> -> vector<1x256xf32>
    %52 = vector.extract_strided_slice %22 {offsets = [0, 16], sizes = [1, 240], strides = [1, 1]} : vector<1x256xf32> to vector<1x240xf32>
    %53 = vector.extract_strided_slice %22 {offsets = [0, 0], sizes = [1, 16], strides = [1, 1]} : vector<1x256xf32> to vector<1x16xf32>
    %54 = tpu.concatenate %52, %53 in 1 : vector<1x240xf32>, vector<1x16xf32> -> vector<1x256xf32>
    %55 = vector.extract_strided_slice %39 {offsets = [0, 16], sizes = [1, 240], strides = [1, 1]} : vector<1x256xf32> to vector<1x240xf32>
    %56 = vector.extract_strided_slice %39 {offsets = [0, 0], sizes = [1, 16], strides = [1, 1]} : vector<1x256xf32> to vector<1x16xf32>
    %57 = tpu.concatenate %55, %56 in 1 : vector<1x240xf32>, vector<1x16xf32> -> vector<1x256xf32>
    %c0_8 = arith.constant 0 : index
    %c0_9 = arith.constant 0 : index
    %58 = vector.load %arg2[%c0_8, %c0_9] : memref<16x9xf32, #tpu.memory_space<vmem>>, vector<16x1xf32>
    %59 = vector.broadcast %58 : vector<16x1xf32> to vector<16x256xf32>
    %60 = vector.broadcast %42 : vector<1x256xf32> to vector<16x256xf32>
    %61 = arith.mulf %59, %60 : vector<16x256xf32>
    %62 = arith.addf %25, %61 : vector<16x256xf32>
    %c0_10 = arith.constant 0 : index
    %c1 = arith.constant 1 : index
    %63 = vector.load %arg2[%c0_10, %c1] : memref<16x9xf32, #tpu.memory_space<vmem>>, vector<16x1xf32>
    %64 = vector.broadcast %63 : vector<16x1xf32> to vector<16x256xf32>
    %65 = vector.broadcast %45 : vector<1x256xf32> to vector<16x256xf32>
    %66 = arith.mulf %64, %65 : vector<16x256xf32>
    %67 = arith.addf %62, %66 : vector<16x256xf32>
    %c0_11 = arith.constant 0 : index
    %c2 = arith.constant 2 : index
    %68 = vector.load %arg2[%c0_11, %c2] : memref<16x9xf32, #tpu.memory_space<vmem>>, vector<16x1xf32>
    %69 = vector.broadcast %68 : vector<16x1xf32> to vector<16x256xf32>
    %70 = vector.broadcast %48 : vector<1x256xf32> to vector<16x256xf32>
    %71 = arith.mulf %69, %70 : vector<16x256xf32>
    %72 = arith.addf %67, %71 : vector<16x256xf32>
    %c0_12 = arith.constant 0 : index
    %c3 = arith.constant 3 : index
    %73 = vector.load %arg2[%c0_12, %c3] : memref<16x9xf32, #tpu.memory_space<vmem>>, vector<16x1xf32>
    %74 = vector.broadcast %73 : vector<16x1xf32> to vector<16x256xf32>
    %75 = vector.broadcast %32 : vector<1x256xf32> to vector<16x256xf32>
    %76 = arith.mulf %74, %75 : vector<16x256xf32>
    %77 = arith.addf %72, %76 : vector<16x256xf32>
    %c0_13 = arith.constant 0 : index
    %c4 = arith.constant 4 : index
    %78 = vector.load %arg2[%c0_13, %c4] : memref<16x9xf32, #tpu.memory_space<vmem>>, vector<16x1xf32>
    %79 = vector.broadcast %78 : vector<16x1xf32> to vector<16x256xf32>
    %80 = vector.broadcast %22 : vector<1x256xf32> to vector<16x256xf32>
    %81 = arith.mulf %79, %80 : vector<16x256xf32>
    %82 = arith.addf %77, %81 : vector<16x256xf32>
    %c0_14 = arith.constant 0 : index
    %c5 = arith.constant 5 : index
    %83 = vector.load %arg2[%c0_14, %c5] : memref<16x9xf32, #tpu.memory_space<vmem>>, vector<16x1xf32>
    %84 = vector.broadcast %83 : vector<16x1xf32> to vector<16x256xf32>
    %85 = vector.broadcast %39 : vector<1x256xf32> to vector<16x256xf32>
    %86 = arith.mulf %84, %85 : vector<16x256xf32>
    %87 = arith.addf %82, %86 : vector<16x256xf32>
    %c0_15 = arith.constant 0 : index
    %c6 = arith.constant 6 : index
    %88 = vector.load %arg2[%c0_15, %c6] : memref<16x9xf32, #tpu.memory_space<vmem>>, vector<16x1xf32>
    %89 = vector.broadcast %88 : vector<16x1xf32> to vector<16x256xf32>
    %90 = vector.broadcast %51 : vector<1x256xf32> to vector<16x256xf32>
    %91 = arith.mulf %89, %90 : vector<16x256xf32>
    %92 = arith.addf %87, %91 : vector<16x256xf32>
    %c0_16 = arith.constant 0 : index
    %c7 = arith.constant 7 : index
    %93 = vector.load %arg2[%c0_16, %c7] : memref<16x9xf32, #tpu.memory_space<vmem>>, vector<16x1xf32>
    %94 = vector.broadcast %93 : vector<16x1xf32> to vector<16x256xf32>
    %95 = vector.broadcast %54 : vector<1x256xf32> to vector<16x256xf32>
    %96 = arith.mulf %94, %95 : vector<16x256xf32>
    %97 = arith.addf %92, %96 : vector<16x256xf32>
    %c0_17 = arith.constant 0 : index
    %c8 = arith.constant 8 : index
    %98 = vector.load %arg2[%c0_17, %c8] : memref<16x9xf32, #tpu.memory_space<vmem>>, vector<16x1xf32>
    %99 = vector.broadcast %98 : vector<16x1xf32> to vector<16x256xf32>
    %100 = vector.broadcast %57 : vector<1x256xf32> to vector<16x256xf32>
    %101 = arith.mulf %99, %100 : vector<16x256xf32>
    %102 = arith.addf %97, %101 : vector<16x256xf32>
    %103 = math.absf %102 : vector<16x256xf32>
    %cst = arith.constant 0.000000e+00 : f32
    %104 = vector.broadcast %cst : f32 to vector<16x256xf32>
    %105 = arith.subf %104, %103 : vector<16x256xf32>
    %106 = math.exp %105 : vector<16x256xf32>
    %cst_18 = arith.constant 0.000000e+00 : f32
    %107 = vector.broadcast %cst_18 : f32 to vector<16x256xf32>
    %108 = arith.cmpf ogt, %102, %107 : vector<16x256xf32>
    %cst_19 = arith.constant 1.000000e+00 : f32
    %109 = vector.broadcast %cst_19 : f32 to vector<16x256xf32>
    %110 = arith.subf %106, %109 : vector<16x256xf32>
    %111 = arith.select %108, %102, %110 : vector<16x256xi1>, vector<16x256xf32>
    %cst_20 = arith.constant 0.000000e+00 : f32
    %112 = vector.broadcast %cst_20 : f32 to vector<16x256xf32>
    %113 = arith.cmpf ogt, %102, %112 : vector<16x256xf32>
    %cst_21 = arith.constant 1.000000e+00 : f32
    %114 = vector.broadcast %cst_21 : f32 to vector<16x256xf32>
    %115 = arith.subf %106, %114 : vector<16x256xf32>
    %cst_22 = arith.constant 0.000000e+00 : f32
    %116 = vector.broadcast %cst_22 : f32 to vector<16x256xf32>
    %117 = arith.subf %116, %102 : vector<16x256xf32>
    %118 = arith.select %113, %115, %117 : vector<16x256xi1>, vector<16x256xf32>
    %119 = tpu.concatenate %111, %118 in 0 : vector<16x256xf32>, vector<16x256xf32> -> vector<32x256xf32>
    %c0_23 = arith.constant 0 : index
    %c0_24 = arith.constant 0 : index
    %120 = vector.load %arg4[%c0_23, %c0_24] : memref<32x32xbf16, #tpu.memory_space<vmem>>, vector<32x32xbf16>
    %121 = arith.truncf %119 : vector<32x256xf32> to vector<32x256xbf16>
    %cst_25 = arith.constant dense<0.000000e+00> : vector<32x256xf32>
    %122 = tpu.matmul %120, %121, %cst_25 {dimension_numbers = #tpu.dot_dimension_numbers<[1], [0], [0], [1], [0, 0, 1, 1], [], []>} : vector<32x32xbf16>, vector<32x256xbf16>, vector<32x256xf32> -> vector<32x256xf32>
    %c0_26 = arith.constant 0 : index
    %c0_27 = arith.constant 0 : index
    %123 = vector.load %arg5[%c0_26, %c0_27] : memref<32x1xf32, #tpu.memory_space<vmem>>, vector<32x1xf32>
    %124 = vector.broadcast %123 : vector<32x1xf32> to vector<32x256xf32>
    %125 = arith.addf %122, %124 : vector<32x256xf32>
    %cst_28 = arith.constant 0.000000e+00 : f32
    %126 = vector.broadcast %cst_28 : f32 to vector<32x256xf32>
    %127 = arith.cmpf ogt, %125, %126 : vector<32x256xf32>
    %cst_29 = arith.constant 0.00999999977 : f32
    %128 = vector.broadcast %cst_29 : f32 to vector<32x256xf32>
    %129 = arith.mulf %128, %125 : vector<32x256xf32>
    %130 = arith.select %127, %125, %129 : vector<32x256xi1>, vector<32x256xf32>
    %131 = vector.extract_strided_slice %130 {offsets = [0, 15], sizes = [32, 241], strides = [1, 1]} : vector<32x256xf32> to vector<32x241xf32>
    %132 = vector.extract_strided_slice %130 {offsets = [0, 0], sizes = [32, 15], strides = [1, 1]} : vector<32x256xf32> to vector<32x15xf32>
    %133 = tpu.concatenate %131, %132 in 1 : vector<32x241xf32>, vector<32x15xf32> -> vector<32x256xf32>
    %134 = vector.extract_strided_slice %130 {offsets = [0, 255], sizes = [32, 1], strides = [1, 1]} : vector<32x256xf32> to vector<32x1xf32>
    %135 = vector.extract_strided_slice %130 {offsets = [0, 0], sizes = [32, 255], strides = [1, 1]} : vector<32x256xf32> to vector<32x255xf32>
    %136 = tpu.concatenate %134, %135 in 1 : vector<32x1xf32>, vector<32x255xf32> -> vector<32x256xf32>
    %137 = vector.shape_cast %18 : vector<1x256xi1> to vector<1x256xi1>
    %138 = vector.broadcast %137 : vector<1x256xi1> to vector<32x256xi1>
    %139 = arith.select %138, %133, %136 : vector<32x256xi1>, vector<32x256xf32>
    %140 = vector.extract_strided_slice %130 {offsets = [0, 241], sizes = [32, 15], strides = [1, 1]} : vector<32x256xf32> to vector<32x15xf32>
    %141 = vector.extract_strided_slice %130 {offsets = [0, 0], sizes = [32, 241], strides = [1, 1]} : vector<32x256xf32> to vector<32x241xf32>
    %142 = tpu.concatenate %140, %141 in 1 : vector<32x15xf32>, vector<32x241xf32> -> vector<32x256xf32>
    %143 = vector.extract_strided_slice %130 {offsets = [0, 1], sizes = [32, 255], strides = [1, 1]} : vector<32x256xf32> to vector<32x255xf32>
    %144 = vector.extract_strided_slice %130 {offsets = [0, 0], sizes = [32, 1], strides = [1, 1]} : vector<32x256xf32> to vector<32x1xf32>
    %145 = tpu.concatenate %143, %144 in 1 : vector<32x255xf32>, vector<32x1xf32> -> vector<32x256xf32>
    %146 = vector.shape_cast %20 : vector<1x256xi1> to vector<1x256xi1>
    %147 = vector.broadcast %146 : vector<1x256xi1> to vector<32x256xi1>
    %148 = arith.select %147, %142, %145 : vector<32x256xi1>, vector<32x256xf32>
    %149 = vector.extract_strided_slice %139 {offsets = [0, 240], sizes = [32, 16], strides = [1, 1]} : vector<32x256xf32> to vector<32x16xf32>
    %150 = vector.extract_strided_slice %139 {offsets = [0, 0], sizes = [32, 240], strides = [1, 1]} : vector<32x256xf32> to vector<32x240xf32>
    %151 = tpu.concatenate %149, %150 in 1 : vector<32x16xf32>, vector<32x240xf32> -> vector<32x256xf32>
    %152 = vector.extract_strided_slice %130 {offsets = [0, 240], sizes = [32, 16], strides = [1, 1]} : vector<32x256xf32> to vector<32x16xf32>
    %153 = vector.extract_strided_slice %130 {offsets = [0, 0], sizes = [32, 240], strides = [1, 1]} : vector<32x256xf32> to vector<32x240xf32>
    %154 = tpu.concatenate %152, %153 in 1 : vector<32x16xf32>, vector<32x240xf32> -> vector<32x256xf32>
    %155 = vector.extract_strided_slice %148 {offsets = [0, 240], sizes = [32, 16], strides = [1, 1]} : vector<32x256xf32> to vector<32x16xf32>
    %156 = vector.extract_strided_slice %148 {offsets = [0, 0], sizes = [32, 240], strides = [1, 1]} : vector<32x256xf32> to vector<32x240xf32>
    %157 = tpu.concatenate %155, %156 in 1 : vector<32x16xf32>, vector<32x240xf32> -> vector<32x256xf32>
    %158 = vector.extract_strided_slice %139 {offsets = [0, 16], sizes = [32, 240], strides = [1, 1]} : vector<32x256xf32> to vector<32x240xf32>
    %159 = vector.extract_strided_slice %139 {offsets = [0, 0], sizes = [32, 16], strides = [1, 1]} : vector<32x256xf32> to vector<32x16xf32>
    %160 = tpu.concatenate %158, %159 in 1 : vector<32x240xf32>, vector<32x16xf32> -> vector<32x256xf32>
    %161 = vector.extract_strided_slice %130 {offsets = [0, 16], sizes = [32, 240], strides = [1, 1]} : vector<32x256xf32> to vector<32x240xf32>
    %162 = vector.extract_strided_slice %130 {offsets = [0, 0], sizes = [32, 16], strides = [1, 1]} : vector<32x256xf32> to vector<32x16xf32>
    %163 = tpu.concatenate %161, %162 in 1 : vector<32x240xf32>, vector<32x16xf32> -> vector<32x256xf32>
    %164 = vector.extract_strided_slice %148 {offsets = [0, 16], sizes = [32, 240], strides = [1, 1]} : vector<32x256xf32> to vector<32x240xf32>
    %165 = vector.extract_strided_slice %148 {offsets = [0, 0], sizes = [32, 16], strides = [1, 1]} : vector<32x256xf32> to vector<32x16xf32>
    %166 = tpu.concatenate %164, %165 in 1 : vector<32x240xf32>, vector<32x16xf32> -> vector<32x256xf32>
    %167 = arith.truncf %151 : vector<32x256xf32> to vector<32x256xbf16>
    %c0_30 = arith.constant 0 : index
    %c0_31 = arith.constant 0 : index
    %168 = vector.load %arg11[%c0_30, %c0_31] : memref<288x256xbf16, #tpu.memory_space<vmem>>, vector<32x256xbf16>
    tpu.vector_store %arg11[%c0_30, %c0_31], %167 {strides = array<i32>} : memref<288x256xbf16, #tpu.memory_space<vmem>>, vector<32x256xbf16>,
    %169 = arith.truncf %154 : vector<32x256xf32> to vector<32x256xbf16>
    %c32 = arith.constant 32 : index
    %c0_32 = arith.constant 0 : index
    %170 = vector.load %arg11[%c32, %c0_32] : memref<288x256xbf16, #tpu.memory_space<vmem>>, vector<32x256xbf16>
    tpu.vector_store %arg11[%c32, %c0_32], %169 {strides = array<i32>} : memref<288x256xbf16, #tpu.memory_space<vmem>>, vector<32x256xbf16>,
    %171 = arith.truncf %157 : vector<32x256xf32> to vector<32x256xbf16>
    %c64 = arith.constant 64 : index
    %c0_33 = arith.constant 0 : index
    %172 = vector.load %arg11[%c64, %c0_33] : memref<288x256xbf16, #tpu.memory_space<vmem>>, vector<32x256xbf16>
    tpu.vector_store %arg11[%c64, %c0_33], %171 {strides = array<i32>} : memref<288x256xbf16, #tpu.memory_space<vmem>>, vector<32x256xbf16>,
    %173 = arith.truncf %139 : vector<32x256xf32> to vector<32x256xbf16>
    %c96 = arith.constant 96 : index
    %c0_34 = arith.constant 0 : index
    %174 = vector.load %arg11[%c96, %c0_34] : memref<288x256xbf16, #tpu.memory_space<vmem>>, vector<32x256xbf16>
    tpu.vector_store %arg11[%c96, %c0_34], %173 {strides = array<i32>} : memref<288x256xbf16, #tpu.memory_space<vmem>>, vector<32x256xbf16>,
    %175 = arith.truncf %130 : vector<32x256xf32> to vector<32x256xbf16>
    %c128 = arith.constant 128 : index
    %c0_35 = arith.constant 0 : index
    %176 = vector.load %arg11[%c128, %c0_35] : memref<288x256xbf16, #tpu.memory_space<vmem>>, vector<32x256xbf16>
    tpu.vector_store %arg11[%c128, %c0_35], %175 {strides = array<i32>} : memref<288x256xbf16, #tpu.memory_space<vmem>>, vector<32x256xbf16>,
    %177 = arith.truncf %148 : vector<32x256xf32> to vector<32x256xbf16>
    %c160 = arith.constant 160 : index
    %c0_36 = arith.constant 0 : index
    %178 = vector.load %arg11[%c160, %c0_36] : memref<288x256xbf16, #tpu.memory_space<vmem>>, vector<32x256xbf16>
    tpu.vector_store %arg11[%c160, %c0_36], %177 {strides = array<i32>} : memref<288x256xbf16, #tpu.memory_space<vmem>>, vector<32x256xbf16>,
    %179 = arith.truncf %160 : vector<32x256xf32> to vector<32x256xbf16>
    %c192 = arith.constant 192 : index
    %c0_37 = arith.constant 0 : index
    %180 = vector.load %arg11[%c192, %c0_37] : memref<288x256xbf16, #tpu.memory_space<vmem>>, vector<32x256xbf16>
    tpu.vector_store %arg11[%c192, %c0_37], %179 {strides = array<i32>} : memref<288x256xbf16, #tpu.memory_space<vmem>>, vector<32x256xbf16>,
    %181 = arith.truncf %163 : vector<32x256xf32> to vector<32x256xbf16>
    %c224 = arith.constant 224 : index
    %c0_38 = arith.constant 0 : index
    %182 = vector.load %arg11[%c224, %c0_38] : memref<288x256xbf16, #tpu.memory_space<vmem>>, vector<32x256xbf16>
    tpu.vector_store %arg11[%c224, %c0_38], %181 {strides = array<i32>} : memref<288x256xbf16, #tpu.memory_space<vmem>>, vector<32x256xbf16>,
    %183 = arith.truncf %166 : vector<32x256xf32> to vector<32x256xbf16>
    %c256 = arith.constant 256 : index
    %c0_39 = arith.constant 0 : index
    %184 = vector.load %arg11[%c256, %c0_39] : memref<288x256xbf16, #tpu.memory_space<vmem>>, vector<32x256xbf16>
    tpu.vector_store %arg11[%c256, %c0_39], %183 {strides = array<i32>} : memref<288x256xbf16, #tpu.memory_space<vmem>>, vector<32x256xbf16>,
    %c0_40 = arith.constant 0 : index
    %c0_41 = arith.constant 0 : index
    %185 = vector.load %arg6[%c0_40, %c0_41] : memref<64x288xbf16, #tpu.memory_space<vmem>>, vector<64x288xbf16>
    %c0_42 = arith.constant 0 : index
    %c0_43 = arith.constant 0 : index
    %186 = vector.load %arg11[%c0_42, %c0_43] : memref<288x256xbf16, #tpu.memory_space<vmem>>, vector<288x256xbf16>
    %cst_44 = arith.constant dense<0.000000e+00> : vector<64x256xf32>
    %187 = tpu.matmul %185, %186, %cst_44 {dimension_numbers = #tpu.dot_dimension_numbers<[1], [0], [0], [1], [0, 0, 1, 1], [], []>} : vector<64x288xbf16>, vector<288x256xbf16>, vector<64x256xf32> -> vector<64x256xf32>
    %c0_45 = arith.constant 0 : index
    %c0_46 = arith.constant 0 : index
    %188 = vector.load %arg7[%c0_45, %c0_46] : memref<64x1xf32, #tpu.memory_space<vmem>>, vector<64x1xf32>
    %189 = vector.broadcast %188 : vector<64x1xf32> to vector<64x256xf32>
    %190 = arith.addf %187, %189 : vector<64x256xf32>
    %191 = vector.extract_strided_slice %190 {offsets = [0, 0], sizes = [32, 256], strides = [1, 1]} : vector<64x256xf32> to vector<32x256xf32>
    %192 = vector.extract_strided_slice %190 {offsets = [32, 0], sizes = [32, 256], strides = [1, 1]} : vector<64x256xf32> to vector<32x256xf32>
    %193 = arith.negf %192 : vector<32x256xf32>
    %194 = math.exp %193 : vector<32x256xf32>
    %cst_47 = arith.constant 1.000000e+00 : f32
    %195 = vector.broadcast %cst_47 : f32 to vector<32x256xf32>
    %196 = arith.addf %195, %194 : vector<32x256xf32>
    %197 = arith.divf %195, %196 : vector<32x256xf32>
    %198 = arith.mulf %191, %197 : vector<32x256xf32>
    %c0_48 = arith.constant 0 : index
    %c0_49 = arith.constant 0 : index
    %199 = vector.load %arg8[%c0_48, %c0_49] : memref<4x32xbf16, #tpu.memory_space<vmem>>, vector<4x32xbf16>
    %200 = arith.truncf %198 : vector<32x256xf32> to vector<32x256xbf16>
    %cst_50 = arith.constant dense<0.000000e+00> : vector<4x256xf32>
    %201 = tpu.matmul %199, %200, %cst_50 {dimension_numbers = #tpu.dot_dimension_numbers<[1], [0], [0], [1], [0, 0, 1, 1], [], []>} : vector<4x32xbf16>, vector<32x256xbf16>, vector<4x256xf32> -> vector<4x256xf32>
    %c0_51 = arith.constant 0 : index
    %c0_52 = arith.constant 0 : index
    %202 = vector.load %arg9[%c0_51, %c0_52] : memref<4x1xf32, #tpu.memory_space<vmem>>, vector<4x1xf32>
    %203 = vector.broadcast %202 : vector<4x1xf32> to vector<4x256xf32>
    %204 = arith.addf %201, %203 : vector<4x256xf32>
    %205 = math.tanh %204 : vector<4x256xf32>
    %c0_53 = arith.constant 0 : index
    %c0_54 = arith.constant 0 : index
    %c0_55 = arith.constant 0 : index
    %206 = vector.load %arg10[%c0_53, %c0_54, %c0_55] : memref<1x4x256xf32, #tpu.memory_space<vmem>>, vector<1x4x256xf32>
    %207 = vector.shape_cast %206 : vector<1x4x256xf32> to vector<4x256xf32>
    %208 = vector.shape_cast %205 : vector<4x256xf32> to vector<1x4x256xf32>
    tpu.vector_store %arg10[%c0_53, %c0_54, %c0_55], %208 {strides = array<i32>} : memref<1x4x256xf32, #tpu.memory_space<vmem>>, vector<1x4x256xf32>,
    return
  }
  func.func @transform_0(%arg0: i32) -> (i32, i32, i32) {
    %c0_i32 = arith.constant 0 : i32
    %c0_i32_0 = arith.constant 0 : i32
    %c0_i32_1 = arith.constant 0 : i32
    return %arg0, %c0_i32, %c0_i32_0 : i32, i32, i32
  }
  func.func @transform_1(%arg0: i32) -> (i32, i32) {
    %c0_i32 = arith.constant 0 : i32
    %c0_i32_0 = arith.constant 0 : i32
    %c0_i32_1 = arith.constant 0 : i32
    return %c0_i32, %c0_i32_0 : i32, i32
  }
  func.func @transform_2(%arg0: i32) -> (i32, i32) {
    %c0_i32 = arith.constant 0 : i32
    %c0_i32_0 = arith.constant 0 : i32
    %c0_i32_1 = arith.constant 0 : i32
    return %c0_i32, %c0_i32_0 : i32, i32
  }
  func.func @transform_3(%arg0: i32) -> (i32, i32) {
    %c0_i32 = arith.constant 0 : i32
    %c0_i32_0 = arith.constant 0 : i32
    %c0_i32_1 = arith.constant 0 : i32
    return %c0_i32, %c0_i32_0 : i32, i32
  }
  func.func @transform_4(%arg0: i32) -> (i32, i32) {
    %c0_i32 = arith.constant 0 : i32
    %c0_i32_0 = arith.constant 0 : i32
    %c0_i32_1 = arith.constant 0 : i32
    return %c0_i32, %c0_i32_0 : i32, i32
  }
  func.func @transform_5(%arg0: i32) -> (i32, i32) {
    %c0_i32 = arith.constant 0 : i32
    %c0_i32_0 = arith.constant 0 : i32
    %c0_i32_1 = arith.constant 0 : i32
    return %c0_i32, %c0_i32_0 : i32, i32
  }
  func.func @transform_6(%arg0: i32) -> (i32, i32) {
    %c0_i32 = arith.constant 0 : i32
    %c0_i32_0 = arith.constant 0 : i32
    %c0_i32_1 = arith.constant 0 : i32
    return %c0_i32, %c0_i32_0 : i32, i32
  }
  func.func @transform_7(%arg0: i32) -> (i32, i32) {
    %c0_i32 = arith.constant 0 : i32
    %c0_i32_0 = arith.constant 0 : i32
    %c0_i32_1 = arith.constant 0 : i32
    return %c0_i32, %c0_i32_0 : i32, i32
  }
  func.func @transform_8(%arg0: i32) -> (i32, i32) {
    %c0_i32 = arith.constant 0 : i32
    %c0_i32_0 = arith.constant 0 : i32
    %c0_i32_1 = arith.constant 0 : i32
    return %c0_i32, %c0_i32_0 : i32, i32
  }
  func.func @transform_9(%arg0: i32) -> (i32, i32, i32) {
    %c0_i32 = arith.constant 0 : i32
    %c0_i32_0 = arith.constant 0 : i32
    %c0_i32_1 = arith.constant 0 : i32
    return %arg0, %c0_i32, %c0_i32_0 : i32, i32, i32
  }
}

</mosaic_0001>

<llo_original>
// kernel: tpu_custom_call.1
$region0: #{tpu_custom_call.1}
  #allocation0 [shape = 'u32[]', space=smem, size = 0x4, offset = 0x4, fixed_abs, tag = 'smem constant byte address 0x4 - core index']
  #allocation1 [shape = 'u32[144,128]{1,0:T(1,128)}', space=vmem, size = 0x12000, scoped, tag = 'internal scratch']
  #allocation2 [shape = 'bf16[288,256]{1,0:T(16,128)(2,1)}', space=vmem, size = 0x24000, scoped, tag = 'scratch operand']
  %s0 = inlined_call_operand.vmem [shape: f32[2,1,256], index: 0, kind: input, shape index: {}]
  %s1 = inlined_call_operand.vmem [shape: f32[16,9], index: 1, kind: input, shape index: {}]
  %s2 = inlined_call_operand.vmem [shape: f32[16,1], index: 2, kind: input, shape index: {}]
  %s3 = inlined_call_operand.vmem [shape: bf16[32,32], index: 3, kind: input, shape index: {}]
  %s4 = inlined_call_operand.vmem [shape: f32[32,1], index: 4, kind: input, shape index: {}]
  %s5 = inlined_call_operand.vmem [shape: bf16[64,288], index: 5, kind: input, shape index: {}]
  %s6 = inlined_call_operand.vmem [shape: f32[64,1], index: 6, kind: input, shape index: {}]
  %s7 = inlined_call_operand.vmem [shape: bf16[4,32], index: 7, kind: input, shape index: {}]
  %s8 = inlined_call_operand.vmem [shape: f32[4,1], index: 8, kind: input, shape index: {}]
  %s9 = inlined_call_operand.hbm [shape: f32[2,4,256], index: 9, kind: output, shape index: {}]
  %s10 = sld [smem:[#allocation0]]
  $region69: #{tpu_custom_call.1} parent=0
    _
  %s12 = ssub.s32 1, %s10
  %s13 = scalar_select 0, %s12, %s10
  $region1: #{tpu_custom_call.1} parent=0
    #allocation3 [shape = 'u8[8192]{0}', space=vmem, size = 0x2000, scoped, tag = 'output window, operand 0']
    #allocation4 [shape = 's32[2]{0}', space=sflag, size = 0x8, scoped, tag = 'scoped memory for tpu_custom_call.1']
    %14 = vsyncpa [#allocation4], 0
    %s15 = scalar_lea.sflag [#allocation4], 1
    %16 = vsyncpa %s15, 0
    loop: start=0, step=1, limit=4
    $region2: #{tpu_custom_call.1} parent=1 // loop_pre_header
      _
    $region3: #{tpu_custom_call.1} parent=1 // loop_header
      %s18 = sphi 0, %s22
      %p19 = scmp.ge.s32.totalorder %s18, 4
      %s28 = sphi 0, %s30
      %s31 = sphi 0, %s28
      %s32 = sphi 0, %s31
      %s48 = sphi 0, %s32
      %s52 = sphi 0, %s52
      %s54 = sphi 0, %s52
      %s55 = sphi 0, %s54
      %s69 = sphi 0, %s55
      %s73 = sphi 0, %s73
      %s75 = sphi 0, %s73
      %s76 = sphi 0, %s75
      %s90 = sphi 0, %s76
      %s94 = sphi 0, %s94
      %s96 = sphi 0, %s94
      %s97 = sphi 0, %s96
      %s111 = sphi 0, %s97
      %s115 = sphi 0, %s115
      %s117 = sphi 0, %s115
      %s118 = sphi 0, %s117
      %s132 = sphi 0, %s118
      %s136 = sphi 0, %s136
      %s138 = sphi 0, %s136
      %s139 = sphi 0, %s138
      %s153 = sphi 0, %s139
      %s157 = sphi 0, %s157
      %s159 = sphi 0, %s157
      %s160 = sphi 0, %s159
      %s174 = sphi 0, %s160
      %s178 = sphi 0, %s178
      %s180 = sphi 0, %s178
      %s181 = sphi 0, %s180
      %s195 = sphi 0, %s181
      %s199 = sphi 0, %s199
      %s201 = sphi 0, %s199
      %s202 = sphi 0, %s201
      %s216 = sphi 0, %s202
      %s222 = sphi 0, %s224
      %s225 = sphi 0, %s222
      %s226 = sphi 0, %s225
      %s242 = sphi 0, %s226
    $region4: #{tpu_custom_call.1} parent=1 // loop_header_branch
      %21 = sbr.rel (%p19) target = $region8
    $region5: #{tpu_custom_call.1} parent=1 // loop_body
      %s23 = ssub.s32 %s18, 1
      %s24 = ssub.s32 %s18, 2
      %s25 = sadd.s32 %s18, 1
      %s26 = ssub.s32 %s18, %s25
      %p27 = scmp.eq.s32.totalorder %s26, 0
      %s29 = sadd.s32 %s28, 1
      %s30 = scalar_select %p27, %s28, %s29
      %p33 = pneg %p27
      %p34 = scmp.eq.s32.totalorder %s18, 1
      %p35 = por %p33, %p34
      %p36 = scmp.ne.s32.totalorder %s28, %s31
      %p37 = scmp.eq.s32.totalorder %s18, 0
      %p38 = por %p36, %p37
      %p39 = scmp.ne.s32.totalorder %s28, %s31
      %p40 = scmp.eq.s32.totalorder %s23, 1
      %p41 = por %p39, %p40
      %p42 = scmp.ne.s32.totalorder %s31, %s32
      %p43 = scmp.eq.s32.totalorder %s23, 0
      %p44 = por %p42, %p43
      %p45 = scmp.ne.s32.totalorder %s31, %s32
      %p46 = scmp.eq.s32.totalorder %s24, 1
      %p47 = por %p45, %p46
      %p49 = scmp.ne.s32.totalorder %s32, %s48
      %p50 = scmp.eq.s32.totalorder %s24, 0
      %p51 = por %p49, %p50
      %s53 = sadd.s32 %s52, 1
      %p56 = scmp.eq.s32.totalorder %s18, 1
      %p57 = scmp.ne.s32.totalorder %s52, %s54
      %p58 = scmp.eq.s32.totalorder %s18, 0
      %p59 = por %p57, %p58
      %p60 = scmp.ne.s32.totalorder %s52, %s54
      %p61 = scmp.eq.s32.totalorder %s23, 1
      %p62 = por %p60, %p61
      %p63 = scmp.ne.s32.totalorder %s54, %s55
      %p64 = scmp.eq.s32.totalorder %s23, 0
      %p65 = por %p63, %p64
      %p66 = scmp.ne.s32.totalorder %s54, %s55
      %p67 = scmp.eq.s32.totalorder %s24, 1
      %p68 = por %p66, %p67
      %p70 = scmp.ne.s32.totalorder %s55, %s69
      %p71 = scmp.eq.s32.totalorder %s24, 0
      %p72 = por %p70, %p71
      %s74 = sadd.s32 %s73, 1
      %p77 = scmp.eq.s32.totalorder %s18, 1
      %p78 = scmp.ne.s32.totalorder %s73, %s75
      %p79 = scmp.eq.s32.totalorder %s18, 0
      %p80 = por %p78, %p79
      %p81 = scmp.ne.s32.totalorder %s73, %s75
      %p82 = scmp.eq.s32.totalorder %s23, 1
      %p83 = por %p81, %p82
      %p84 = scmp.ne.s32.totalorder %s75, %s76
      %p85 = scmp.eq.s32.totalorder %s23, 0
      %p86 = por %p84, %p85
      %p87 = scmp.ne.s32.totalorder %s75, %s76
      %p88 = scmp.eq.s32.totalorder %s24, 1
      %p89 = por %p87, %p88
      %p91 = scmp.ne.s32.totalorder %s76, %s90
      %p92 = scmp.eq.s32.totalorder %s24, 0
      %p93 = por %p91, %p92
      %s95 = sadd.s32 %s94, 1
      %p98 = scmp.eq.s32.totalorder %s18, 1
      %p99 = scmp.ne.s32.totalorder %s94, %s96
      %p100 = scmp.eq.s32.totalorder %s18, 0
      %p101 = por %p99, %p100
      %p102 = scmp.ne.s32.totalorder %s94, %s96
      %p103 = scmp.eq.s32.totalorder %s23, 1
      %p104 = por %p102, %p103
      %p105 = scmp.ne.s32.totalorder %s96, %s97
      %p106 = scmp.eq.s32.totalorder %s23, 0
      %p107 = por %p105, %p106
      %p108 = scmp.ne.s32.totalorder %s96, %s97
      %p109 = scmp.eq.s32.totalorder %s24, 1
      %p110 = por %p108, %p109
      %p112 = scmp.ne.s32.totalorder %s97, %s111
      %p113 = scmp.eq.s32.totalorder %s24, 0
      %p114 = por %p112, %p113
      %s116 = sadd.s32 %s115, 1
      %p119 = scmp.eq.s32.totalorder %s18, 1
      %p120 = scmp.ne.s32.totalorder %s115, %s117
      %p121 = scmp.eq.s32.totalorder %s18, 0
      %p122 = por %p120, %p121
      %p123 = scmp.ne.s32.totalorder %s115, %s117
      %p124 = scmp.eq.s32.totalorder %s23, 1
      %p125 = por %p123, %p124
      %p126 = scmp.ne.s32.totalorder %s117, %s118
      %p127 = scmp.eq.s32.totalorder %s23, 0
      %p128 = por %p126, %p127
      %p129 = scmp.ne.s32.totalorder %s117, %s118
      %p130 = scmp.eq.s32.totalorder %s24, 1
      %p131 = por %p129, %p130
      %p133 = scmp.ne.s32.totalorder %s118, %s132
      %p134 = scmp.eq.s32.totalorder %s24, 0
      %p135 = por %p133, %p134
      %s137 = sadd.s32 %s136, 1
      %p140 = scmp.eq.s32.totalorder %s18, 1
      %p141 = scmp.ne.s32.totalorder %s136, %s138
      %p142 = scmp.eq.s32.totalorder %s18, 0
      %p143 = por %p141, %p142
      %p144 = scmp.ne.s32.totalorder %s136, %s138
      %p145 = scmp.eq.s32.totalorder %s23, 1
      %p146 = por %p144, %p145
      %p147 = scmp.ne.s32.totalorder %s138, %s139
      %p148 = scmp.eq.s32.totalorder %s23, 0
      %p149 = por %p147, %p148
      %p150 = scmp.ne.s32.totalorder %s138, %s139
      %p151 = scmp.eq.s32.totalorder %s24, 1
      %p152 = por %p150, %p151
      %p154 = scmp.ne.s32.totalorder %s139, %s153
      %p155 = scmp.eq.s32.totalorder %s24, 0
      %p156 = por %p154, %p155
      %s158 = sadd.s32 %s157, 1
      %p161 = scmp.eq.s32.totalorder %s18, 1
      %p162 = scmp.ne.s32.totalorder %s157, %s159
      %p163 = scmp.eq.s32.totalorder %s18, 0
      %p164 = por %p162, %p163
      %p165 = scmp.ne.s32.totalorder %s157, %s159
      %p166 = scmp.eq.s32.totalorder %s23, 1
      %p167 = por %p165, %p166
      %p168 = scmp.ne.s32.totalorder %s159, %s160
      %p169 = scmp.eq.s32.totalorder %s23, 0
      %p170 = por %p168, %p169
      %p171 = scmp.ne.s32.totalorder %s159, %s160
      %p172 = scmp.eq.s32.totalorder %s24, 1
      %p173 = por %p171, %p172
      %p175 = scmp.ne.s32.totalorder %s160, %s174
      %p176 = scmp.eq.s32.totalorder %s24, 0
      %p177 = por %p175, %p176
      %s179 = sadd.s32 %s178, 1
      %p182 = scmp.eq.s32.totalorder %s18, 1
      %p183 = scmp.ne.s32.totalorder %s178, %s180
      %p184 = scmp.eq.s32.totalorder %s18, 0
      %p185 = por %p183, %p184
      %p186 = scmp.ne.s32.totalorder %s178, %s180
      %p187 = scmp.eq.s32.totalorder %s23, 1
      %p188 = por %p186, %p187
      %p189 = scmp.ne.s32.totalorder %s180, %s181
      %p190 = scmp.eq.s32.totalorder %s23, 0
      %p191 = por %p189, %p190
      %p192 = scmp.ne.s32.totalorder %s180, %s181
      %p193 = scmp.eq.s32.totalorder %s24, 1
      %p194 = por %p192, %p193
      %p196 = scmp.ne.s32.totalorder %s181, %s195
      %p197 = scmp.eq.s32.totalorder %s24, 0
      %p198 = por %p196, %p197
      %s200 = sadd.s32 %s199, 1
      %p203 = scmp.eq.s32.totalorder %s18, 1
      %p204 = scmp.ne.s32.totalorder %s199, %s201
      %p205 = scmp.eq.s32.totalorder %s18, 0
      %p206 = por %p204, %p205
      %p207 = scmp.ne.s32.totalorder %s199, %s201
      %p208 = scmp.eq.s32.totalorder %s23, 1
      %p209 = por %p207, %p208
      %p210 = scmp.ne.s32.totalorder %s201, %s202
      %p211 = scmp.eq.s32.totalorder %s23, 0
      %p212 = por %p210, %p211
      %p213 = scmp.ne.s32.totalorder %s201, %s202
      %p214 = scmp.eq.s32.totalorder %s24, 1
      %p215 = por %p213, %p214
      %p217 = scmp.ne.s32.totalorder %s202, %s216
      %p218 = scmp.eq.s32.totalorder %s24, 0
      %p219 = por %p217, %p218
      %s220 = ssub.s32 %s18, %s25
      %p221 = scmp.eq.s32.totalorder %s220, 0
      %s223 = sadd.s32 %s222, 1
      %s224 = scalar_select %p221, %s222, %s223
      %p227 = pneg %p221
      %p228 = scmp.eq.s32.totalorder %s18, 1
      %p229 = por %p227, %p228
      %p230 = scmp.ne.s32.totalorder %s222, %s225
      %p231 = scmp.eq.s32.totalorder %s18, 0
      %p232 = por %p230, %p231
      %p233 = scmp.ne.s32.totalorder %s222, %s225
      %p234 = scmp.eq.s32.totalorder %s23, 1
      %p235 = por %p233, %p234
      %p236 = scmp.ne.s32.totalorder %s225, %s226
      %p237 = scmp.eq.s32.totalorder %s23, 0
      %p238 = por %p236, %p237
      %p239 = scmp.ne.s32.totalorder %s225, %s226
      %p240 = scmp.eq.s32.totalorder %s24, 1
      %p241 = por %p239, %p240
      %p243 = scmp.ne.s32.totalorder %s226, %s242
      %p244 = scmp.eq.s32.totalorder %s24, 0
      %p245 = por %p243, %p244
      %p246 = scmp.le.s32.totalorder 1, %s18
      %p247 = scmp.lt.s32.totalorder %s18, 3
      %p248 = pnand %p246, %p247
      %p249 = pneg %p248
      // Predicated region
      $region9: #{tpu_custom_call.1} parent=5 // pred_check
        _
      $region10: #{tpu_custom_call.1} parent=5 // pred_check_branch
        %251 = sbr.rel (%p248) target = $region12
      $region11: #{tpu_custom_call.1} parent=5 // pred_region
        %s252 = ssub.s32 %s18, 1
        // Predicated region
        $region13: #{tpu_custom_call.1} parent=11 // pred_check
          %p253 = pneg %p65
        $region14: #{tpu_custom_call.1} parent=11 // pred_check_branch
          %255 = sbr.rel (%p253) target = $region16
        $region15: #{tpu_custom_call.1} parent=11 // pred_region
          _
        $region16: #{tpu_custom_call.1} parent=11 // pred_fallthru
          _
        // Predicated region
        $region17: #{tpu_custom_call.1} parent=11 // pred_check
          %p256 = pneg %p86
        $region18: #{tpu_custom_call.1} parent=11 // pred_check_branch
          %258 = sbr.rel (%p256) target = $region20
        $region19: #{tpu_custom_call.1} parent=11 // pred_region
          _
        $region20: #{tpu_custom_call.1} parent=11 // pred_fallthru
          _
        // Predicated region
        $region21: #{tpu_custom_call.1} parent=11 // pred_check
          %p259 = pneg %p107
        $region22: #{tpu_custom_call.1} parent=11 // pred_check_branch
          %261 = sbr.rel (%p259) target = $region24
        $region23: #{tpu_custom_call.1} parent=11 // pred_region
          _
        $region24: #{tpu_custom_call.1} parent=11 // pred_fallthru
          _
        // Predicated region
        $region25: #{tpu_custom_call.1} parent=11 // pred_check
          %p262 = pneg %p128
        $region26: #{tpu_custom_call.1} parent=11 // pred_check_branch
          %264 = sbr.rel (%p262) target = $region28
        $region27: #{tpu_custom_call.1} parent=11 // pred_region
          _
        $region28: #{tpu_custom_call.1} parent=11 // pred_fallthru
          _
        // Predicated region
        $region29: #{tpu_custom_call.1} parent=11 // pred_check
          %p265 = pneg %p149
        $region30: #{tpu_custom_call.1} parent=11 // pred_check_branch
          %267 = sbr.rel (%p265) target = $region32
        $region31: #{tpu_custom_call.1} parent=11 // pred_region
          _
        $region32: #{tpu_custom_call.1} parent=11 // pred_fallthru
          _
        // Predicated region
        $region33: #{tpu_custom_call.1} parent=11 // pred_check
          %p268 = pneg %p170
        $region34: #{tpu_custom_call.1} parent=11 // pred_check_branch
          %270 = sbr.rel (%p268) target = $region36
        $region35: #{tpu_custom_call.1} parent=11 // pred_region
          _
        $region36: #{tpu_custom_call.1} parent=11 // pred_fallthru
          _
        // Predicated region
        $region37: #{tpu_custom_call.1} parent=11 // pred_check
          %p271 = pneg %p191
        $region38: #{tpu_custom_call.1} parent=11 // pred_check_branch
          %273 = sbr.rel (%p271) target = $region40
        $region39: #{tpu_custom_call.1} parent=11 // pred_region
          _
        $region40: #{tpu_custom_call.1} parent=11 // pred_fallthru
          _
        // Predicated region
        $region41: #{tpu_custom_call.1} parent=11 // pred_check
          %p274 = pneg %p212
        $region42: #{tpu_custom_call.1} parent=11 // pred_check_branch
          %276 = sbr.rel (%p274) target = $region44
        $region43: #{tpu_custom_call.1} parent=11 // pred_region
          _
        $region44: #{tpu_custom_call.1} parent=11 // pred_fallthru
          _
      $region12: #{tpu_custom_call.1} parent=5 // pred_fallthru
        _
      %p277 = scmp.lt.s32.totalorder %s18, 2
      // Predicated region
      $region45: #{tpu_custom_call.1} parent=5 // pred_check
        %p278 = pneg %p277
      $region46: #{tpu_custom_call.1} parent=5 // pred_check_branch
        %280 = sbr.rel (%p278) target = $region48
      $region47: #{tpu_custom_call.1} parent=5 // pred_region
        // Predicated region
        $region49: #{tpu_custom_call.1} parent=47 // pred_check
          %p281 = pneg %p38
        $region50: #{tpu_custom_call.1} parent=47 // pred_check_branch
          %283 = sbr.rel (%p281) target = $region52
        $region51: #{tpu_custom_call.1} parent=47 // pred_region
          %p284 = scmp.lt.s32.totalorder %s18, 1
          %s285 = scalar_select %p284, %s18, 1
          %s286 = smul.addr %s285, 2
          %s287 = scalar_lea.vmem %s0, %s286
        $region52: #{tpu_custom_call.1} parent=47 // pred_fallthru
          _
      $region48: #{tpu_custom_call.1} parent=5 // pred_fallthru
        _
      %p288 = scmp.le.s32.totalorder 1, %s18
      %p289 = scmp.lt.s32.totalorder %s18, 3
      %p290 = pnand %p288, %p289
      %p291 = pneg %p290
      // Predicated region
      $region53: #{tpu_custom_call.1} parent=5 // pred_check
        _
      $region54: #{tpu_custom_call.1} parent=5 // pred_check_branch
        %293 = sbr.rel (%p290) target = $region56
      $region55: #{tpu_custom_call.1} parent=5 // pred_region
        %s294 = ssub.s32 %s18, 1
        %p295 = scmp.lt.s32.totalorder %s23, 1
        %s296 = scalar_select %p295, %s23, 1
        %s297 = smul.addr %s296, 2
        %s298 = scalar_lea.vmem %s0, %s297
        %p299 = pneg %p44
        %p300 = pneg %p41
        %p301 = pneg %p65
        %p302 = pneg %p62
        %p303 = pneg %p86
        %p304 = pneg %p83
        %p305 = pneg %p107
        %p306 = pneg %p104
        %p307 = pneg %p128
        %p308 = pneg %p125
        %p309 = pneg %p149
        %p310 = pneg %p146
        %p311 = pneg %p170
        %p312 = pneg %p167
        %p313 = pneg %p191
        %p314 = pneg %p188
        %p315 = pneg %p212
        %p316 = pneg %p209
        %p317 = pneg %p238
        %p318 = pneg %p235
        %s319 = sand.u32 %s225, 1
        %s320 = scalar_lea.sflag [#allocation4], %s319
        %s321 = sand.u32 %s225, 1
        %s322 = smul.addr %s321, 8
        %s323 = scalar_lea.vmem [#allocation3], %s322
        %p324 = scmp.lt.s32.totalorder %s23, 1
        %s325 = scalar_select %p324, %s23, 1
        %s326 = smul.addr %s325, 2
        %s327 = scalar_lea.vmem %s0, %s326
        %v329 = vlaneseq
        %v330 = vand.u32 %v329, 127
        %v331 = vadd.s32 %v330, 128
        %vm332 = vcmp.lt.s32.totalorder %v330, 0
        %v333 = vsub.s32 0, %v330
        %v334 = vsel %vm332, %v333, %v330
        %v335 = vshrl.u32 %v334, 4
        %v336 = vand.u32 %v334, 15
        %v337 = vsub.s32 0, %v336
        %v338 = vsel %vm332, %v337, %v336
        %vm339 = vcmp.lt.s32.totalorder %v331, 0
        %v340 = vsub.s32 0, %v331
        %v341 = vsel %vm339, %v340, %v331
        %v342 = vshrl.u32 %v341, 4
        %v343 = vand.u32 %v341, 15
        %v344 = vsub.s32 0, %v343
        %v345 = vsel %vm339, %v344, %v343
        %vm346 = vcmp.ne.s32.totalorder %v338, 0
        %vm347 = vcmp.ne.s32.totalorder %v345, 0
        %vm348 = vcmp.lt.s32.totalorder %v338, 0
        %vm349 = vcmp.lt.s32.totalorder %v345, 0
        %vm350 = vmand %vm348, %vm346
        %vm351 = vmand %vm349, %vm347
        %v352 = vadd.s32 %v338, 16
        %v353 = vadd.s32 %v345, 16
        %v354 = vsel %vm350, %v352, %v338
        %v355 = vsel %vm351, %v353, %v345
        %vm356 = vcmp.eq.s32.totalorder %v354, 0
        %vm357 = vcmp.eq.s32.totalorder %v355, 0
        %vm358 = vcmp.eq.s32.totalorder %v354, 15
        %vm359 = vcmp.eq.s32.totalorder %v355, 15
        %v360 = vld [vmem:[%s327] sm:$0x3]
        %v361 = vld [vmem:[%s2] sm:$0xff]
        %v362 = vld [vmem:[%s2 + $0x8] sm:$0xff]
        %364 = vset.pattern.permute.xlu0 0
        %365 = vperm.xlu0 %364, %v361
        %v366 = vpop.permute.xlu0 %365
        %369 = vset.pattern.permute.xlu0 0
        %370 = vperm.xlu0 %369, %v362
        %v371 = vpop.permute.xlu0 %370
        %v374 = vlaneseq
        %v375 = vshrl.u32 %v374, 7
        %v376 = vsub.s32 0, %v375
        %v377 = vrot.slane %v360, %v376
        %v378 = vlaneseq
        %v379 = vshrl.u32 %v378, 7
        %v380 = vsub.s32 1, %v379
        %v381 = vrot.slane %v360, %v380
        %382 = vrot.lane.b32.xlu0 %v377, 113
        %v383 = vpop.permute.xlu0 %382
        %384 = vrot.lane.b32.xlu0 %v381, 113
        %v385 = vpop.permute.xlu0 %384
        %vm386 = vcmask 924672
        %v387 = vsel %vm386, %v383, %v385
        %v391 = vsel %vm386, %v385, %v383
        %392 = vrot.lane.b32.xlu0 %v381, 1
        %v393 = vpop.permute.xlu0 %392
        %395 = vrot.lane.b32.xlu0 %v377, 1
        %v396 = vpop.permute.xlu0 %395
        %vm397 = vcmask 7168
        %v398 = vsel %vm397, %v396, %v393
        %v401 = vsel %vm397, %v393, %v396
        %v402 = vsel %vm356, %v387, %v401
        %v403 = vsel %vm357, %v391, %v398
        %404 = vrot.lane.b32.xlu0 %v381, 15
        %v405 = vpop.permute.xlu0 %404
        %407 = vrot.lane.b32.xlu0 %v377, 15
        %v408 = vpop.permute.xlu0 %407
        %vm409 = vcmask 121856
        %v410 = vsel %vm409, %v408, %v405
        %v413 = vsel %vm409, %v405, %v408
        %414 = vrot.lane.b32.xlu0 %v377, 127
        %v415 = vpop.permute.xlu0 %414
        %416 = vrot.lane.b32.xlu0 %v381, 127
        %v417 = vpop.permute.xlu0 %416
        %vm418 = vcmask 1039360
        %v419 = vsel %vm418, %v415, %v417
        %v423 = vsel %vm418, %v417, %v415
        %v424 = vsel %vm358, %v413, %v419
        %v425 = vsel %vm359, %v410, %v423
        %427 = vrot.lane.b32.xlu0 %v403, 16
        %v428 = vpop.permute.xlu0 %427
        %431 = vrot.lane.b32.xlu0 %v402, 16
        %v432 = vpop.permute.xlu0 %431
        %vm433 = vcmask 130048
        %v434 = vsel %vm433, %v432, %v428
        %v437 = vsel %vm433, %v428, %v432
        %438 = vrot.lane.b32.xlu0 %v381, 16
        %v439 = vpop.permute.xlu0 %438
        %441 = vrot.lane.b32.xlu0 %v377, 16
        %v442 = vpop.permute.xlu0 %441
        %v443 = vsel %vm433, %v442, %v439
        %v446 = vsel %vm433, %v439, %v442
        %448 = vrot.lane.b32.xlu0 %v425, 16
        %v449 = vpop.permute.xlu0 %448
        %452 = vrot.lane.b32.xlu0 %v424, 16
        %v453 = vpop.permute.xlu0 %452
        %v454 = vsel %vm433, %v453, %v449
        %v457 = vsel %vm433, %v449, %v453
        %458 = vrot.lane.b32.xlu0 %v402, 112
        %v459 = vpop.permute.xlu0 %458
        %460 = vrot.lane.b32.xlu0 %v403, 112
        %v461 = vpop.permute.xlu0 %460
        %vm462 = vcmask 916480
        %v463 = vsel %vm462, %v459, %v461
        %v467 = vsel %vm462, %v461, %v459
        %468 = vrot.lane.b32.xlu0 %v377, 112
        %v469 = vpop.permute.xlu0 %468
        %470 = vrot.lane.b32.xlu0 %v381, 112
        %v471 = vpop.permute.xlu0 %470
        %v472 = vsel %vm462, %v469, %v471
        %v476 = vsel %vm462, %v471, %v469
        %477 = vrot.lane.b32.xlu0 %v424, 112
        %v478 = vpop.permute.xlu0 %477
        %479 = vrot.lane.b32.xlu0 %v425, 112
        %v480 = vpop.permute.xlu0 %479
        %v481 = vsel %vm462, %v478, %v480
        %v485 = vsel %vm462, %v480, %v478
        %v486 = vld [vmem:[%s1] sm:$0xff]
        %v487 = vld [vmem:[%s1 + $0x8] sm:$0xff]
        %489 = vset.pattern.permute.xlu0 0
        %490 = vperm.xlu0 %489, %v486
        %v491 = vpop.permute.xlu0 %490
        %494 = vset.pattern.permute.xlu0 0
        %495 = vperm.xlu0 %494, %v487
        %v496 = vpop.permute.xlu0 %495
        %v498 = vlaneseq
        %v499 = vshrl.u32 %v498, 7
        %v500 = vsub.s32 0, %v499
        %v501 = vrot.slane %v437, %v500
        %v502 = vlaneseq
        %v503 = vshrl.u32 %v502, 7
        %v504 = vsub.s32 0, %v503
        %v505 = vrot.slane %v434, %v504
        %v506 = vmul.f32 %v491, %v501
        %v507 = vmul.f32 %v491, %v505
        %v508 = vmul.f32 %v496, %v501
        %v509 = vmul.f32 %v496, %v505
        %v510 = vadd.f32 %v366, %v506
        %v511 = vadd.f32 %v366, %v507
        %v512 = vadd.f32 %v371, %v508
        %v513 = vadd.f32 %v371, %v509
        %514 = vset.pattern.permute.xlu0 1
        %515 = vperm.xlu0 %514, %v486
        %v516 = vpop.permute.xlu0 %515
        %518 = vset.pattern.permute.xlu0 1
        %519 = vperm.xlu0 %518, %v487
        %v520 = vpop.permute.xlu0 %519
        %v522 = vlaneseq
        %v523 = vshrl.u32 %v522, 7
        %v524 = vsub.s32 0, %v523
        %v525 = vrot.slane %v446, %v524
        %v526 = vlaneseq
        %v527 = vshrl.u32 %v526, 7
        %v528 = vsub.s32 0, %v527
        %v529 = vrot.slane %v443, %v528
        %v530 = vmul.f32 %v516, %v525
        %v531 = vmul.f32 %v516, %v529
        %v532 = vmul.f32 %v520, %v525
        %v533 = vmul.f32 %v520, %v529
        %v534 = vadd.f32 %v510, %v530
        %v535 = vadd.f32 %v511, %v531
        %v536 = vadd.f32 %v512, %v532
        %v537 = vadd.f32 %v513, %v533
        %538 = vset.pattern.permute.xlu0 2
        %539 = vperm.xlu0 %538, %v486
        %v540 = vpop.permute.xlu0 %539
        %542 = vset.pattern.permute.xlu0 2
        %543 = vperm.xlu0 %542, %v487
        %v544 = vpop.permute.xlu0 %543
        %v546 = vlaneseq
        %v547 = vshrl.u32 %v546, 7
        %v548 = vsub.s32 0, %v547
        %v549 = vrot.slane %v457, %v548
        %v550 = vlaneseq
        %v551 = vshrl.u32 %v550, 7
        %v552 = vsub.s32 0, %v551
        %v553 = vrot.slane %v454, %v552
        %v554 = vmul.f32 %v540, %v549
        %v555 = vmul.f32 %v540, %v553
        %v556 = vmul.f32 %v544, %v549
        %v557 = vmul.f32 %v544, %v553
        %v558 = vadd.f32 %v534, %v554
        %v559 = vadd.f32 %v535, %v555
        %v560 = vadd.f32 %v536, %v556
        %v561 = vadd.f32 %v537, %v557
        %562 = vset.pattern.permute.xlu0 3
        %563 = vperm.xlu0 %562, %v486
        %v564 = vpop.permute.xlu0 %563
        %566 = vset.pattern.permute.xlu0 3
        %567 = vperm.xlu0 %566, %v487
        %v568 = vpop.permute.xlu0 %567
        %v570 = vlaneseq
        %v571 = vshrl.u32 %v570, 7
        %v572 = vsub.s32 0, %v571
        %v573 = vrot.slane %v402, %v572
        %v574 = vlaneseq
        %v575 = vshrl.u32 %v574, 7
        %v576 = vsub.s32 0, %v575
        %v577 = vrot.slane %v403, %v576
        %v578 = vmul.f32 %v564, %v573
        %v579 = vmul.f32 %v564, %v577
        %v580 = vmul.f32 %v568, %v573
        %v581 = vmul.f32 %v568, %v577
        %v582 = vadd.f32 %v558, %v578
        %v583 = vadd.f32 %v559, %v579
        %v584 = vadd.f32 %v560, %v580
        %v585 = vadd.f32 %v561, %v581
        %586 = vset.pattern.permute.xlu0 4
        %587 = vperm.xlu0 %586, %v486
        %v588 = vpop.permute.xlu0 %587
        %590 = vset.pattern.permute.xlu0 4
        %591 = vperm.xlu0 %590, %v487
        %v592 = vpop.permute.xlu0 %591
        %v596 = vmul.f32 %v588, %v377
        %v597 = vmul.f32 %v588, %v381
        %v598 = vmul.f32 %v592, %v377
        %v599 = vmul.f32 %v592, %v381
        %v600 = vadd.f32 %v582, %v596
        %v601 = vadd.f32 %v583, %v597
        %v602 = vadd.f32 %v584, %v598
        %v603 = vadd.f32 %v585, %v599
        %604 = vset.pattern.permute.xlu0 5
        %605 = vperm.xlu0 %604, %v486
        %v606 = vpop.permute.xlu0 %605
        %608 = vset.pattern.permute.xlu0 5
        %609 = vperm.xlu0 %608, %v487
        %v610 = vpop.permute.xlu0 %609
        %v612 = vlaneseq
        %v613 = vshrl.u32 %v612, 7
        %v614 = vsub.s32 0, %v613
        %v615 = vrot.slane %v424, %v614
        %v616 = vlaneseq
        %v617 = vshrl.u32 %v616, 7
        %v618 = vsub.s32 0, %v617
        %v619 = vrot.slane %v425, %v618
        %v620 = vmul.f32 %v606, %v615
        %v621 = vmul.f32 %v606, %v619
        %v622 = vmul.f32 %v610, %v615
        %v623 = vmul.f32 %v610, %v619
        %v624 = vadd.f32 %v600, %v620
        %v625 = vadd.f32 %v601, %v621
        %v626 = vadd.f32 %v602, %v622
        %v627 = vadd.f32 %v603, %v623
        %628 = vset.pattern.permute.xlu0 6
        %629 = vperm.xlu0 %628, %v486
        %v630 = vpop.permute.xlu0 %629
        %632 = vset.pattern.permute.xlu0 6
        %633 = vperm.xlu0 %632, %v487
        %v634 = vpop.permute.xlu0 %633
        %v636 = vlaneseq
        %v637 = vshrl.u32 %v636, 7
        %v638 = vsub.s32 0, %v637
        %v639 = vrot.slane %v463, %v638
        %v640 = vlaneseq
        %v641 = vshrl.u32 %v640, 7
        %v642 = vsub.s32 0, %v641
        %v643 = vrot.slane %v467, %v642
        %v644 = vmul.f32 %v630, %v639
        %v645 = vmul.f32 %v630, %v643
        %v646 = vmul.f32 %v634, %v639
        %v647 = vmul.f32 %v634, %v643
        %v648 = vadd.f32 %v624, %v644
        %v649 = vadd.f32 %v625, %v645
        %v650 = vadd.f32 %v626, %v646
        %v651 = vadd.f32 %v627, %v647
        %652 = vset.pattern.permute.xlu0 7
        %653 = vperm.xlu0 %652, %v486
        %v654 = vpop.permute.xlu0 %653
        %656 = vset.pattern.permute.xlu0 7
        %657 = vperm.xlu0 %656, %v487
        %v658 = vpop.permute.xlu0 %657
        %v660 = vlaneseq
        %v661 = vshrl.u32 %v660, 7
        %v662 = vsub.s32 0, %v661
        %v663 = vrot.slane %v472, %v662
        %v664 = vlaneseq
        %v665 = vshrl.u32 %v664, 7
        %v666 = vsub.s32 0, %v665
        %v667 = vrot.slane %v476, %v666
        %v668 = vmul.f32 %v654, %v663
        %v669 = vmul.f32 %v654, %v667
        %v670 = vmul.f32 %v658, %v663
        %v671 = vmul.f32 %v658, %v667
        %v672 = vadd.f32 %v648, %v668
        %v673 = vadd.f32 %v649, %v669
        %v674 = vadd.f32 %v650, %v670
        %v675 = vadd.f32 %v651, %v671
        %676 = vset.pattern.permute.xlu0 8
        %677 = vperm.xlu0 %676, %v486
        %v678 = vpop.permute.xlu0 %677
        %680 = vset.pattern.permute.xlu0 8
        %681 = vperm.xlu0 %680, %v487
        %v682 = vpop.permute.xlu0 %681
        %v684 = vlaneseq
        %v685 = vshrl.u32 %v684, 7
        %v686 = vsub.s32 0, %v685
        %v687 = vrot.slane %v481, %v686
        %v688 = vlaneseq
        %v689 = vshrl.u32 %v688, 7
        %v690 = vsub.s32 0, %v689
        %v691 = vrot.slane %v485, %v690
        %v692 = vmul.f32 %v678, %v687
        %v693 = vmul.f32 %v678, %v691
        %v694 = vmul.f32 %v682, %v687
        %v695 = vmul.f32 %v682, %v691
        %v696 = vadd.f32 %v672, %v692
        %v697 = vadd.f32 %v673, %v693
        %v698 = vadd.f32 %v674, %v694
        %v699 = vadd.f32 %v675, %v695
        %v700 = vand.u32 2147483647, %v696
        %v701 = vand.u32 2147483647, %v697
        %v702 = vand.u32 2147483647, %v698
        %v703 = vand.u32 2147483647, %v699
        %v704 = vsub.f32 0.0, %v700
        %v705 = vsub.f32 0.0, %v701
        %v706 = vsub.f32 0.0, %v702
        %v707 = vsub.f32 0.0, %v703
        %v708 = vmul.f32 %v704, 1.442695
        %v709 = vpow.pop %v708
        %v710 = vmul.f32 %v705, 1.442695
        %v711 = vpow.pop %v710
        %v712 = vmul.f32 %v706, 1.442695
        %v713 = vpow.pop %v712
        %v714 = vmul.f32 %v707, 1.442695
        %v715 = vpow.pop %v714
        %vm716 = vcmp.gt.f32.partialorder %v696, 0.0
        %vm717 = vcmp.gt.f32.partialorder %v697, 0.0
        %vm718 = vcmp.gt.f32.partialorder %v698, 0.0
        %vm719 = vcmp.gt.f32.partialorder %v699, 0.0
        %v720 = vsub.f32 %v709, 1.0
        %v721 = vsub.f32 %v711, 1.0
        %v722 = vsub.f32 %v713, 1.0
        %v723 = vsub.f32 %v715, 1.0
        %v724 = vsel %vm716, %v696, %v720
        %v725 = vsel %vm717, %v697, %v721
        %v726 = vsel %vm718, %v698, %v722
        %v727 = vsel %vm719, %v699, %v723
        %v728 = vsub.f32 0.0, %v696
        %v729 = vsub.f32 0.0, %v697
        %v730 = vsub.f32 0.0, %v698
        %v731 = vsub.f32 0.0, %v699
        %v732 = vsel %vm716, %v720, %v728
        %v733 = vsel %vm717, %v721, %v729
        %v734 = vsel %vm718, %v722, %v730
        %v735 = vsel %vm719, %v723, %v731
        %v736 = vld [vmem:[%s3] sm:$0xf]
        %v737 = vld [vmem:[%s3 + $0x4] sm:$0xf]
        %v738 = vld [vmem:[%s3 + $0x8] sm:$0xf]
        %v739 = vld [vmem:[%s3 + $0xc] sm:$0xf]
        %v740 = vpack.c.bf16 %v726, %v724
        %v741 = vpack.c.bf16 %v727, %v725
        %v742 = vpack.c.bf16 %v734, %v732
        %v743 = vpack.c.bf16 %v735, %v733
        %v744 = vld [vmem:[%s4] sm:$0xff]
        %v745 = vld [vmem:[%s4 + $0x8] sm:$0xff]
        %v746 = vld [vmem:[%s4 + $0x10] sm:$0xff]
        %v747 = vld [vmem:[%s4 + $0x18] sm:$0xff]
        %749 = vset.pattern.permute.xlu0 0
        %750 = vperm.xlu0 %749, %v744
        %v751 = vpop.permute.xlu0 %750
        %754 = vset.pattern.permute.xlu0 0
        %755 = vperm.xlu0 %754, %v745
        %v756 = vpop.permute.xlu0 %755
        %759 = vset.pattern.permute.xlu0 0
        %760 = vperm.xlu0 %759, %v746
        %v761 = vpop.permute.xlu0 %760
        %764 = vset.pattern.permute.xlu0 0
        %765 = vperm.xlu0 %764, %v747
        %v766 = vpop.permute.xlu0 %765
        %v772 = vunpack.c.l.b16 %v736
        %v773 = vunpack.c.l.b16 %v737
        %v774 = vunpack.c.l.b16 %v738
        %v775 = vunpack.c.l.b16 %v739
        %v776 = vpack.c.b16 %v773, %v772
        %v777 = vpack.c.b16 %v775, %v774
        %vm778 = vcmask 261120
        %v780 = vsel %vm778, %v776, 0
        %v783 = vsel %vm778, %v777, 0
        %785 = vmatprep.subr.bf16.mxu0 %v741
        %786 = vmatpush1.bf16.msra.mxu0 %v740
        %787 = vmatprep.subr.bf16.mxu0 %v743
        %788 = vmatpush1.bf16.msra.mxu0 %v742
        %789 = vmatprep.subr.bf16.mxu0 0
        %790 = vmatpush1.bf16.msra.mxu0 0
        %791 = vmatprep.subr.bf16.mxu0 0
        %792 = vmatpush1.bf16.msra.mxu0 0
        %793 = vmatprep.subr.bf16.mxu0 0
        %794 = vmatpush1.bf16.msra.mxu0 0
        %795 = vmatprep.subr.bf16.mxu0 0
        %796 = vmatpush1.bf16.msra.mxu0 0
        %797 = vmatprep.subr.bf16.mxu0 0
        %798 = vmatpush1.bf16.msra.mxu0 0
        %799 = vmatprep.subr.bf16.mxu0 0
        %800 = vmatpush1.bf16.msra.mxu0 0
        %801 = vmatprep.subr.bf16.mxu0 0
        %802 = vmatpush1.bf16.msra.mxu0 0
        %803 = vmatprep.subr.bf16.mxu0 0
        %804 = vmatpush1.bf16.msra.mxu0 0
        %805 = vmatprep.subr.bf16.mxu0 0
        %806 = vmatpush1.bf16.msra.mxu0 0
        %807 = vmatprep.subr.bf16.mxu0 0
        %808 = vmatpush1.bf16.msra.mxu0 0
        %809 = vmatprep.subr.bf16.mxu0 0
        %810 = vmatpush1.bf16.msra.mxu0 0
        %811 = vmatprep.subr.bf16.mxu0 0
        %812 = vmatpush1.bf16.msra.mxu0 0
        %813 = vmatprep.subr.bf16.mxu0 0
        %814 = vmatpush1.bf16.msra.mxu0 0
        %815 = vmatprep.subr.bf16.mxu0 0
        %816 = vmatpush1.bf16.msra.mxu0 0
        %817 = vmatprep.mubr.bf16.mxu0 0
        %818 = vmatmul.mubr.bf16.gmra.mrb[0].mxu0 %v780
        %v819 = vpop.f32.mrb[0].mxu0
        %v820 = vadd.f32 %v751, %v819
        %v821 = vpop.f32.mrb[0].mxu0
        %v822 = vadd.f32 %v751, %v821
        %v823 = vpop.f32.mrb[0].mxu0
        %v824 = vadd.f32 %v756, %v823
        %v825 = vpop.f32.mrb[0].mxu0
        %v826 = vadd.f32 %v756, %v825
        %827 = vmatprep.mubr.bf16.mxu0 0
        %828 = vmatmul.mubr.bf16.gmra.mrb[0].mxu0 %v783
        %v829 = vpop.f32.mrb[0].mxu0
        %v830 = vadd.f32 %v761, %v829
        %v831 = vpop.f32.mrb[0].mxu0
        %v832 = vadd.f32 %v761, %v831
        %v833 = vpop.f32.mrb[0].mxu0
        %v834 = vadd.f32 %v766, %v833
        %v835 = vpop.f32.mrb[0].mxu0
        %v836 = vadd.f32 %v766, %v835
        %837 = vdwg.mxu0
        %vm838 = vcmp.gt.f32.partialorder %v820, 0.0
        %vm839 = vcmp.gt.f32.partialorder %v822, 0.0
        %vm840 = vcmp.gt.f32.partialorder %v824, 0.0
        %vm841 = vcmp.gt.f32.partialorder %v826, 0.0
        %vm842 = vcmp.gt.f32.partialorder %v830, 0.0
        %vm843 = vcmp.gt.f32.partialorder %v832, 0.0
        %vm844 = vcmp.gt.f32.partialorder %v834, 0.0
        %vm845 = vcmp.gt.f32.partialorder %v836, 0.0
        %v846 = vmul.f32 %v820, 0.01
        %v847 = vmul.f32 %v822, 0.01
        %v848 = vmul.f32 %v824, 0.01
        %v849 = vmul.f32 %v826, 0.01
        %v850 = vmul.f32 %v830, 0.01
        %v851 = vmul.f32 %v832, 0.01
        %v852 = vmul.f32 %v834, 0.01
        %v853 = vmul.f32 %v836, 0.01
        %v854 = vsel %vm838, %v820, %v846
        %v855 = vsel %vm839, %v822, %v847
        %v856 = vsel %vm840, %v824, %v848
        %v857 = vsel %vm841, %v826, %v849
        %v858 = vsel %vm842, %v830, %v850
        %v859 = vsel %vm843, %v832, %v851
        %v860 = vsel %vm844, %v834, %v852
        %v861 = vsel %vm845, %v836, %v853
        %870 = vrot.lane.b32.xlu0 %v854, 113
        %v871 = vpop.permute.xlu0 %870
        %872 = vrot.lane.b32.xlu0 %v855, 113
        %v873 = vpop.permute.xlu0 %872
        %874 = vrot.lane.b32.xlu0 %v856, 113
        %v875 = vpop.permute.xlu0 %874
        %876 = vrot.lane.b32.xlu0 %v857, 113
        %v877 = vpop.permute.xlu0 %876
        %878 = vrot.lane.b32.xlu0 %v858, 113
        %v879 = vpop.permute.xlu0 %878
        %880 = vrot.lane.b32.xlu0 %v859, 113
        %v881 = vpop.permute.xlu0 %880
        %882 = vrot.lane.b32.xlu0 %v860, 113
        %v883 = vpop.permute.xlu0 %882
        %884 = vrot.lane.b32.xlu0 %v861, 113
        %v885 = vpop.permute.xlu0 %884
        %v886 = vsel %vm386, %v871, %v873
        %v887 = vsel %vm386, %v875, %v877
        %v888 = vsel %vm386, %v879, %v881
        %v889 = vsel %vm386, %v883, %v885
        %v902 = vsel %vm386, %v873, %v871
        %v903 = vsel %vm386, %v877, %v875
        %v904 = vsel %vm386, %v881, %v879
        %v905 = vsel %vm386, %v885, %v883
        %906 = vrot.lane.b32.xlu0 %v855, 1
        %v907 = vpop.permute.xlu0 %906
        %908 = vrot.lane.b32.xlu0 %v857, 1
        %v909 = vpop.permute.xlu0 %908
        %910 = vrot.lane.b32.xlu0 %v859, 1
        %v911 = vpop.permute.xlu0 %910
        %912 = vrot.lane.b32.xlu0 %v861, 1
        %v913 = vpop.permute.xlu0 %912
        %918 = vrot.lane.b32.xlu0 %v854, 1
        %v919 = vpop.permute.xlu0 %918
        %920 = vrot.lane.b32.xlu0 %v856, 1
        %v921 = vpop.permute.xlu0 %920
        %922 = vrot.lane.b32.xlu0 %v858, 1
        %v923 = vpop.permute.xlu0 %922
        %924 = vrot.lane.b32.xlu0 %v860, 1
        %v925 = vpop.permute.xlu0 %924
        %v926 = vsel %vm397, %v919, %v907
        %v927 = vsel %vm397, %v921, %v909
        %v928 = vsel %vm397, %v923, %v911
        %v929 = vsel %vm397, %v925, %v913
        %v938 = vsel %vm397, %v907, %v919
        %v939 = vsel %vm397, %v909, %v921
        %v940 = vsel %vm397, %v911, %v923
        %v941 = vsel %vm397, %v913, %v925
        %v942 = vsel %vm356, 1, 0
        %v943 = vsel %vm357, 1, 0
        %vm944 = vcmp.eq.s32.totalorder %v942, 1
        %vm945 = vcmp.eq.s32.totalorder %v943, 1
        %v946 = vsel %vm944, %v886, %v938
        %v947 = vsel %vm945, %v902, %v926
        %v948 = vsel %vm944, %v887, %v939
        %v949 = vsel %vm945, %v903, %v927
        %v950 = vsel %vm944, %v888, %v940
        %v951 = vsel %vm945, %v904, %v928
        %v952 = vsel %vm944, %v889, %v941
        %v953 = vsel %vm945, %v905, %v929
        %954 = vrot.lane.b32.xlu0 %v855, 15
        %v955 = vpop.permute.xlu0 %954
        %956 = vrot.lane.b32.xlu0 %v857, 15
        %v957 = vpop.permute.xlu0 %956
        %958 = vrot.lane.b32.xlu0 %v859, 15
        %v959 = vpop.permute.xlu0 %958
        %960 = vrot.lane.b32.xlu0 %v861, 15
        %v961 = vpop.permute.xlu0 %960
        %966 = vrot.lane.b32.xlu0 %v854, 15
        %v967 = vpop.permute.xlu0 %966
        %968 = vrot.lane.b32.xlu0 %v856, 15
        %v969 = vpop.permute.xlu0 %968
        %970 = vrot.lane.b32.xlu0 %v858, 15
        %v971 = vpop.permute.xlu0 %970
        %972 = vrot.lane.b32.xlu0 %v860, 15
        %v973 = vpop.permute.xlu0 %972
        %v974 = vsel %vm409, %v967, %v955
        %v975 = vsel %vm409, %v969, %v957
        %v976 = vsel %vm409, %v971, %v959
        %v977 = vsel %vm409, %v973, %v961
        %v986 = vsel %vm409, %v955, %v967
        %v987 = vsel %vm409, %v957, %v969
        %v988 = vsel %vm409, %v959, %v971
        %v989 = vsel %vm409, %v961, %v973
        %990 = vrot.lane.b32.xlu0 %v854, 127
        %v991 = vpop.permute.xlu0 %990
        %992 = vrot.lane.b32.xlu0 %v855, 127
        %v993 = vpop.permute.xlu0 %992
        %994 = vrot.lane.b32.xlu0 %v856, 127
        %v995 = vpop.permute.xlu0 %994
        %996 = vrot.lane.b32.xlu0 %v857, 127
        %v997 = vpop.permute.xlu0 %996
        %998 = vrot.lane.b32.xlu0 %v858, 127
        %v999 = vpop.permute.xlu0 %998
        %1000 = vrot.lane.b32.xlu0 %v859, 127
        %v1001 = vpop.permute.xlu0 %1000
        %1002 = vrot.lane.b32.xlu0 %v860, 127
        %v1003 = vpop.permute.xlu0 %1002
        %1004 = vrot.lane.b32.xlu0 %v861, 127
        %v1005 = vpop.permute.xlu0 %1004
        %v1006 = vsel %vm418, %v991, %v993
        %v1007 = vsel %vm418, %v995, %v997
        %v1008 = vsel %vm418, %v999, %v1001
        %v1009 = vsel %vm418, %v1003, %v1005
        %v1022 = vsel %vm418, %v993, %v991
        %v1023 = vsel %vm418, %v997, %v995
        %v1024 = vsel %vm418, %v1001, %v999
        %v1025 = vsel %vm418, %v1005, %v1003
        %v1026 = vsel %vm358, 1, 0
        %v1027 = vsel %vm359, 1, 0
        %vm1028 = vcmp.eq.s32.totalorder %v1026, 1
        %vm1029 = vcmp.eq.s32.totalorder %v1027, 1
        %v1030 = vsel %vm1028, %v986, %v1006
        %v1031 = vsel %vm1029, %v974, %v1022
        %v1032 = vsel %vm1028, %v987, %v1007
        %v1033 = vsel %vm1029, %v975, %v1023
        %v1034 = vsel %vm1028, %v988, %v1008
        %v1035 = vsel %vm1029, %v976, %v1024
        %v1036 = vsel %vm1028, %v989, %v1009
        %v1037 = vsel %vm1029, %v977, %v1025
        %1042 = vrot.lane.b32.xlu0 %v947, 16
        %v1043 = vpop.permute.xlu0 %1042
        %1044 = vrot.lane.b32.xlu0 %v949, 16
        %v1045 = vpop.permute.xlu0 %1044
        %1046 = vrot.lane.b32.xlu0 %v951, 16
        %v1047 = vpop.permute.xlu0 %1046
        %1048 = vrot.lane.b32.xlu0 %v953, 16
        %v1049 = vpop.permute.xlu0 %1048
        %1058 = vrot.lane.b32.xlu0 %v946, 16
        %v1059 = vpop.permute.xlu0 %1058
        %1060 = vrot.lane.b32.xlu0 %v948, 16
        %v1061 = vpop.permute.xlu0 %1060
        %1062 = vrot.lane.b32.xlu0 %v950, 16
        %v1063 = vpop.permute.xlu0 %1062
        %1064 = vrot.lane.b32.xlu0 %v952, 16
        %v1065 = vpop.permute.xlu0 %1064
        %v1066 = vsel %vm433, %v1059, %v1043
        %v1067 = vsel %vm433, %v1061, %v1045
        %v1068 = vsel %vm433, %v1063, %v1047
        %v1069 = vsel %vm433, %v1065, %v1049
        %v1078 = vsel %vm433, %v1043, %v1059
        %v1079 = vsel %vm433, %v1045, %v1061
        %v1080 = vsel %vm433, %v1047, %v1063
        %v1081 = vsel %vm433, %v1049, %v1065
        %1082 = vrot.lane.b32.xlu0 %v855, 16
        %v1083 = vpop.permute.xlu0 %1082
        %1084 = vrot.lane.b32.xlu0 %v857, 16
        %v1085 = vpop.permute.xlu0 %1084
        %1086 = vrot.lane.b32.xlu0 %v859, 16
        %v1087 = vpop.permute.xlu0 %1086
        %1088 = vrot.lane.b32.xlu0 %v861, 16
        %v1089 = vpop.permute.xlu0 %1088
        %1094 = vrot.lane.b32.xlu0 %v854, 16
        %v1095 = vpop.permute.xlu0 %1094
        %1096 = vrot.lane.b32.xlu0 %v856, 16
        %v1097 = vpop.permute.xlu0 %1096
        %1098 = vrot.lane.b32.xlu0 %v858, 16
        %v1099 = vpop.permute.xlu0 %1098
        %1100 = vrot.lane.b32.xlu0 %v860, 16
        %v1101 = vpop.permute.xlu0 %1100
        %v1102 = vsel %vm433, %v1095, %v1083
        %v1103 = vsel %vm433, %v1097, %v1085
        %v1104 = vsel %vm433, %v1099, %v1087
        %v1105 = vsel %vm433, %v1101, %v1089
        %v1114 = vsel %vm433, %v1083, %v1095
        %v1115 = vsel %vm433, %v1085, %v1097
        %v1116 = vsel %vm433, %v1087, %v1099
        %v1117 = vsel %vm433, %v1089, %v1101
        %1122 = vrot.lane.b32.xlu0 %v1031, 16
        %v1123 = vpop.permute.xlu0 %1122
        %1124 = vrot.lane.b32.xlu0 %v1033, 16
        %v1125 = vpop.permute.xlu0 %1124
        %1126 = vrot.lane.b32.xlu0 %v1035, 16
        %v1127 = vpop.permute.xlu0 %1126
        %1128 = vrot.lane.b32.xlu0 %v1037, 16
        %v1129 = vpop.permute.xlu0 %1128
        %1138 = vrot.lane.b32.xlu0 %v1030, 16
        %v1139 = vpop.permute.xlu0 %1138
        %1140 = vrot.lane.b32.xlu0 %v1032, 16
        %v1141 = vpop.permute.xlu0 %1140
        %1142 = vrot.lane.b32.xlu0 %v1034, 16
        %v1143 = vpop.permute.xlu0 %1142
        %1144 = vrot.lane.b32.xlu0 %v1036, 16
        %v1145 = vpop.permute.xlu0 %1144
        %v1146 = vsel %vm433, %v1139, %v1123
        %v1147 = vsel %vm433, %v1141, %v1125
        %v1148 = vsel %vm433, %v1143, %v1127
        %v1149 = vsel %vm433, %v1145, %v1129
        %v1158 = vsel %vm433, %v1123, %v1139
        %v1159 = vsel %vm433, %v1125, %v1141
        %v1160 = vsel %vm433, %v1127, %v1143
        %v1161 = vsel %vm433, %v1129, %v1145
        %1162 = vrot.lane.b32.xlu0 %v946, 112
        %v1163 = vpop.permute.xlu0 %1162
        %1164 = vrot.lane.b32.xlu0 %v947, 112
        %v1165 = vpop.permute.xlu0 %1164
        %1166 = vrot.lane.b32.xlu0 %v948, 112
        %v1167 = vpop.permute.xlu0 %1166
        %1168 = vrot.lane.b32.xlu0 %v949, 112
        %v1169 = vpop.permute.xlu0 %1168
        %1170 = vrot.lane.b32.xlu0 %v950, 112
        %v1171 = vpop.permute.xlu0 %1170
        %1172 = vrot.lane.b32.xlu0 %v951, 112
        %v1173 = vpop.permute.xlu0 %1172
        %1174 = vrot.lane.b32.xlu0 %v952, 112
        %v1175 = vpop.permute.xlu0 %1174
        %1176 = vrot.lane.b32.xlu0 %v953, 112
        %v1177 = vpop.permute.xlu0 %1176
        %v1178 = vsel %vm462, %v1163, %v1165
        %v1179 = vsel %vm462, %v1167, %v1169
        %v1180 = vsel %vm462, %v1171, %v1173
        %v1181 = vsel %vm462, %v1175, %v1177
        %v1194 = vsel %vm462, %v1165, %v1163
        %v1195 = vsel %vm462, %v1169, %v1167
        %v1196 = vsel %vm462, %v1173, %v1171
        %v1197 = vsel %vm462, %v1177, %v1175
        %1198 = vrot.lane.b32.xlu0 %v854, 112
        %v1199 = vpop.permute.xlu0 %1198
        %1200 = vrot.lane.b32.xlu0 %v855, 112
        %v1201 = vpop.permute.xlu0 %1200
        %1202 = vrot.lane.b32.xlu0 %v856, 112
        %v1203 = vpop.permute.xlu0 %1202
        %1204 = vrot.lane.b32.xlu0 %v857, 112
        %v1205 = vpop.permute.xlu0 %1204
        %1206 = vrot.lane.b32.xlu0 %v858, 112
        %v1207 = vpop.permute.xlu0 %1206
        %1208 = vrot.lane.b32.xlu0 %v859, 112
        %v1209 = vpop.permute.xlu0 %1208
        %1210 = vrot.lane.b32.xlu0 %v860, 112
        %v1211 = vpop.permute.xlu0 %1210
        %1212 = vrot.lane.b32.xlu0 %v861, 112
        %v1213 = vpop.permute.xlu0 %1212
        %v1214 = vsel %vm462, %v1199, %v1201
        %v1215 = vsel %vm462, %v1203, %v1205
        %v1216 = vsel %vm462, %v1207, %v1209
        %v1217 = vsel %vm462, %v1211, %v1213
        %v1230 = vsel %vm462, %v1201, %v1199
        %v1231 = vsel %vm462, %v1205, %v1203
        %v1232 = vsel %vm462, %v1209, %v1207
        %v1233 = vsel %vm462, %v1213, %v1211
        %1234 = vrot.lane.b32.xlu0 %v1030, 112
        %v1235 = vpop.permute.xlu0 %1234
        %1236 = vrot.lane.b32.xlu0 %v1031, 112
        %v1237 = vpop.permute.xlu0 %1236
        %1238 = vrot.lane.b32.xlu0 %v1032, 112
        %v1239 = vpop.permute.xlu0 %1238
        %1240 = vrot.lane.b32.xlu0 %v1033, 112
        %v1241 = vpop.permute.xlu0 %1240
        %1242 = vrot.lane.b32.xlu0 %v1034, 112
        %v1243 = vpop.permute.xlu0 %1242
        %1244 = vrot.lane.b32.xlu0 %v1035, 112
        %v1245 = vpop.permute.xlu0 %1244
        %1246 = vrot.lane.b32.xlu0 %v1036, 112
        %v1247 = vpop.permute.xlu0 %1246
        %1248 = vrot.lane.b32.xlu0 %v1037, 112
        %v1249 = vpop.permute.xlu0 %1248
        %v1250 = vsel %vm462, %v1235, %v1237
        %v1251 = vsel %vm462, %v1239, %v1241
        %v1252 = vsel %vm462, %v1243, %v1245
        %v1253 = vsel %vm462, %v1247, %v1249
        %v1266 = vsel %vm462, %v1237, %v1235
        %v1267 = vsel %vm462, %v1241, %v1239
        %v1268 = vsel %vm462, %v1245, %v1243
        %v1269 = vsel %vm462, %v1249, %v1247
        %v1270 = vpack.c.bf16 %v1079, %v1078
        %v1271 = vpack.c.bf16 %v1067, %v1066
        %v1272 = vpack.c.bf16 %v1081, %v1080
        %v1273 = vpack.c.bf16 %v1069, %v1068
        %1274 = vst [vmem:[#allocation2] sm:$0xff] %v1270
        %1275 = vst [vmem:[#allocation2 + $0x8] sm:$0xff] %v1271
        %1276 = vst [vmem:[#allocation2 + $0x10] sm:$0xff] %v1272
        %1277 = vst [vmem:[#allocation2 + $0x18] sm:$0xff] %v1273
        %v1278 = vpack.c.bf16 %v1115, %v1114
        %v1279 = vpack.c.bf16 %v1103, %v1102
        %v1280 = vpack.c.bf16 %v1117, %v1116
        %v1281 = vpack.c.bf16 %v1105, %v1104
        %1282 = vst [vmem:[#allocation2 + $0x20] sm:$0xff] %v1278
        %1283 = vst [vmem:[#allocation2 + $0x28] sm:$0xff] %v1279
        %1284 = vst [vmem:[#allocation2 + $0x30] sm:$0xff] %v1280
        %1285 = vst [vmem:[#allocation2 + $0x38] sm:$0xff] %v1281
        %v1286 = vpack.c.bf16 %v1159, %v1158
        %v1287 = vpack.c.bf16 %v1147, %v1146
        %v1288 = vpack.c.bf16 %v1161, %v1160
        %v1289 = vpack.c.bf16 %v1149, %v1148
        %1290 = vst [vmem:[#allocation2 + $0x40] sm:$0xff] %v1286
        %1291 = vst [vmem:[#allocation2 + $0x48] sm:$0xff] %v1287
        %1292 = vst [vmem:[#allocation2 + $0x50] sm:$0xff] %v1288
        %1293 = vst [vmem:[#allocation2 + $0x58] sm:$0xff] %v1289
        %v1294 = vpack.c.bf16 %v948, %v946
        %v1295 = vpack.c.bf16 %v949, %v947
        %v1296 = vpack.c.bf16 %v952, %v950
        %v1297 = vpack.c.bf16 %v953, %v951
        %1298 = vst [vmem:[#allocation2 + $0x60] sm:$0xff] %v1294
        %1299 = vst [vmem:[#allocation2 + $0x68] sm:$0xff] %v1295
        %1300 = vst [vmem:[#allocation2 + $0x70] sm:$0xff] %v1296
        %1301 = vst [vmem:[#allocation2 + $0x78] sm:$0xff] %v1297
        %v1302 = vpack.c.bf16 %v856, %v854
        %v1303 = vpack.c.bf16 %v857, %v855
        %v1304 = vpack.c.bf16 %v860, %v858
        %v1305 = vpack.c.bf16 %v861, %v859
        %1306 = vst [vmem:[#allocation2 + $0x80] sm:$0xff] %v1302
        %1307 = vst [vmem:[#allocation2 + $0x88] sm:$0xff] %v1303
        %1308 = vst [vmem:[#allocation2 + $0x90] sm:$0xff] %v1304
        %1309 = vst [vmem:[#allocation2 + $0x98] sm:$0xff] %v1305
        %v1310 = vpack.c.bf16 %v1032, %v1030
        %v1311 = vpack.c.bf16 %v1033, %v1031
        %v1312 = vpack.c.bf16 %v1036, %v1034
        %v1313 = vpack.c.bf16 %v1037, %v1035
        %1314 = vst [vmem:[#allocation2 + $0xa0] sm:$0xff] %v1310
        %1315 = vst [vmem:[#allocation2 + $0xa8] sm:$0xff] %v1311
        %1316 = vst [vmem:[#allocation2 + $0xb0] sm:$0xff] %v1312
        %1317 = vst [vmem:[#allocation2 + $0xb8] sm:$0xff] %v1313
        %v1318 = vpack.c.bf16 %v1179, %v1178
        %v1319 = vpack.c.bf16 %v1195, %v1194
        %v1320 = vpack.c.bf16 %v1181, %v1180
        %v1321 = vpack.c.bf16 %v1197, %v1196
        %1322 = vst [vmem:[#allocation2 + $0xc0] sm:$0xff] %v1318
        %1323 = vst [vmem:[#allocation2 + $0xc8] sm:$0xff] %v1319
        %1324 = vst [vmem:[#allocation2 + $0xd0] sm:$0xff] %v1320
        %1325 = vst [vmem:[#allocation2 + $0xd8] sm:$0xff] %v1321
        %v1326 = vpack.c.bf16 %v1215, %v1214
        %v1327 = vpack.c.bf16 %v1231, %v1230
        %v1328 = vpack.c.bf16 %v1217, %v1216
        %v1329 = vpack.c.bf16 %v1233, %v1232
        %1330 = vst [vmem:[#allocation2 + $0xe0] sm:$0xff] %v1326
        %1331 = vst [vmem:[#allocation2 + $0xe8] sm:$0xff] %v1327
        %1332 = vst [vmem:[#allocation2 + $0xf0] sm:$0xff] %v1328
        %1333 = vst [vmem:[#allocation2 + $0xf8] sm:$0xff] %v1329
        %v1334 = vpack.c.bf16 %v1251, %v1250
        %v1335 = vpack.c.bf16 %v1267, %v1266
        %v1336 = vpack.c.bf16 %v1253, %v1252
        %v1337 = vpack.c.bf16 %v1269, %v1268
        %1338 = vst [vmem:[#allocation2 + $0x100] sm:$0xff] %v1334
        %1339 = vst [vmem:[#allocation2 + $0x108] sm:$0xff] %v1335
        %1340 = vst [vmem:[#allocation2 + $0x110] sm:$0xff] %v1336
        %1341 = vst [vmem:[#allocation2 + $0x118] sm:$0xff] %v1337
        %v1342 = vld [vmem:[%s5] sm:$0xff]
        %v1343 = vld [vmem:[%s5 + $0x8] sm:$0xf]
        %v1344 = vld [vmem:[%s5 + $0xc] sm:$0xff]
        %v1345 = vld [vmem:[%s5 + $0x14] sm:$0xf]
        %v1346 = vld [vmem:[%s5 + $0x18] sm:$0xff]
        %v1347 = vld [vmem:[%s5 + $0x20] sm:$0xf]
        %v1348 = vld [vmem:[%s5 + $0x24] sm:$0xff]
        %v1349 = vld [vmem:[%s5 + $0x2c] sm:$0xf]
        %v1350 = vld [vmem:[%s5 + $0x30] sm:$0xff]
        %v1351 = vld [vmem:[%s5 + $0x38] sm:$0xf]
        %v1352 = vld [vmem:[%s5 + $0x3c] sm:$0xff]
        %v1353 = vld [vmem:[%s5 + $0x44] sm:$0xf]
        %v1354 = vld [vmem:[%s5 + $0x48] sm:$0xff]
        %v1355 = vld [vmem:[%s5 + $0x50] sm:$0xf]
        %v1356 = vld [vmem:[%s5 + $0x54] sm:$0xff]
        %v1357 = vld [vmem:[%s5 + $0x5c] sm:$0xf]
        %v1358 = vld [vmem:[#allocation2] sm:$0xff]
        %v1359 = vld [vmem:[#allocation2 + $0x8] sm:$0xff]
        %v1360 = vld [vmem:[#allocation2 + $0x10] sm:$0xff]
        %v1361 = vld [vmem:[#allocation2 + $0x18] sm:$0xff]
        %v1362 = vld [vmem:[#allocation2 + $0x20] sm:$0xff]
        %v1363 = vld [vmem:[#allocation2 + $0x28] sm:$0xff]
        %v1364 = vld [vmem:[#allocation2 + $0x30] sm:$0xff]
        %v1365 = vld [vmem:[#allocation2 + $0x38] sm:$0xff]
        %v1366 = vld [vmem:[#allocation2 + $0x40] sm:$0xff]
        %v1367 = vld [vmem:[#allocation2 + $0x48] sm:$0xff]
        %v1368 = vld [vmem:[#allocation2 + $0x50] sm:$0xff]
        %v1369 = vld [vmem:[#allocation2 + $0x58] sm:$0xff]
        %v1370 = vld [vmem:[#allocation2 + $0x60] sm:$0xff]
        %v1371 = vld [vmem:[#allocation2 + $0x68] sm:$0xff]
        %v1372 = vld [vmem:[#allocation2 + $0x70] sm:$0xff]
        %v1373 = vld [vmem:[#allocation2 + $0x78] sm:$0xff]
        %v1374 = vld [vmem:[#allocation2 + $0x80] sm:$0xff]
        %v1375 = vld [vmem:[#allocation2 + $0x88] sm:$0xff]
        %v1376 = vld [vmem:[#allocation2 + $0x90] sm:$0xff]
        %v1377 = vld [vmem:[#allocation2 + $0x98] sm:$0xff]
        %v1378 = vld [vmem:[#allocation2 + $0xa0] sm:$0xff]
        %v1379 = vld [vmem:[#allocation2 + $0xa8] sm:$0xff]
        %v1380 = vld [vmem:[#allocation2 + $0xb0] sm:$0xff]
        %v1381 = vld [vmem:[#allocation2 + $0xb8] sm:$0xff]
        %v1382 = vld [vmem:[#allocation2 + $0xc0] sm:$0xff]
        %v1383 = vld [vmem:[#allocation2 + $0xc8] sm:$0xff]
        %v1384 = vld [vmem:[#allocation2 + $0xd0] sm:$0xff]
        %v1385 = vld [vmem:[#allocation2 + $0xd8] sm:$0xff]
        %v1386 = vld [vmem:[#allocation2 + $0xe0] sm:$0xff]
        %v1387 = vld [vmem:[#allocation2 + $0xe8] sm:$0xff]
        %v1388 = vld [vmem:[#allocation2 + $0xf0] sm:$0xff]
        %v1389 = vld [vmem:[#allocation2 + $0xf8] sm:$0xff]
        %v1390 = vld [vmem:[#allocation2 + $0x100] sm:$0xff]
        %v1391 = vld [vmem:[#allocation2 + $0x108] sm:$0xff]
        %v1392 = vld [vmem:[#allocation2 + $0x110] sm:$0xff]
        %v1393 = vld [vmem:[#allocation2 + $0x118] sm:$0xff]
        %v1394 = vld [vmem:[%s6] sm:$0xff]
        %v1395 = vld [vmem:[%s6 + $0x8] sm:$0xff]
        %v1396 = vld [vmem:[%s6 + $0x10] sm:$0xff]
        %v1397 = vld [vmem:[%s6 + $0x18] sm:$0xff]
        %v1398 = vld [vmem:[%s6 + $0x20] sm:$0xff]
        %v1399 = vld [vmem:[%s6 + $0x28] sm:$0xff]
        %v1400 = vld [vmem:[%s6 + $0x30] sm:$0xff]
        %v1401 = vld [vmem:[%s6 + $0x38] sm:$0xff]
        %1403 = vset.pattern.permute.xlu0 0
        %1404 = vperm.xlu0 %1403, %v1394
        %v1405 = vpop.permute.xlu0 %1404
        %1408 = vset.pattern.permute.xlu0 0
        %1409 = vperm.xlu0 %1408, %v1395
        %v1410 = vpop.permute.xlu0 %1409
        %1413 = vset.pattern.permute.xlu0 0
        %1414 = vperm.xlu0 %1413, %v1396
        %v1415 = vpop.permute.xlu0 %1414
        %1418 = vset.pattern.permute.xlu0 0
        %1419 = vperm.xlu0 %1418, %v1397
        %v1420 = vpop.permute.xlu0 %1419
        %1423 = vset.pattern.permute.xlu0 0
        %1424 = vperm.xlu0 %1423, %v1398
        %v1425 = vpop.permute.xlu0 %1424
        %1428 = vset.pattern.permute.xlu0 0
        %1429 = vperm.xlu0 %1428, %v1399
        %v1430 = vpop.permute.xlu0 %1429
        %1433 = vset.pattern.permute.xlu0 0
        %1434 = vperm.xlu0 %1433, %v1400
        %v1435 = vpop.permute.xlu0 %1434
        %1438 = vset.pattern.permute.xlu0 0
        %1439 = vperm.xlu0 %1438, %v1401
        %v1440 = vpop.permute.xlu0 %1439
        %v1458 = vunpack.c.l.b16 %v1342
        %v1459 = vunpack.c.h.b16 %v1342
        %v1460 = vunpack.c.l.b16 %v1343
        %v1461 = vunpack.c.l.b16 %v1344
        %v1462 = vunpack.c.h.b16 %v1344
        %v1463 = vunpack.c.l.b16 %v1345
        %v1464 = vunpack.c.l.b16 %v1346
        %v1465 = vunpack.c.h.b16 %v1346
        %v1466 = vunpack.c.l.b16 %v1347
        %v1467 = vunpack.c.l.b16 %v1348
        %v1468 = vunpack.c.h.b16 %v1348
        %v1469 = vunpack.c.l.b16 %v1349
        %v1470 = vunpack.c.l.b16 %v1350
        %v1471 = vunpack.c.h.b16 %v1350
        %v1472 = vunpack.c.l.b16 %v1351
        %v1473 = vunpack.c.l.b16 %v1352
        %v1474 = vunpack.c.h.b16 %v1352
        %v1475 = vunpack.c.l.b16 %v1353
        %v1476 = vunpack.c.l.b16 %v1354
        %v1477 = vunpack.c.h.b16 %v1354
        %v1478 = vunpack.c.l.b16 %v1355
        %v1479 = vunpack.c.l.b16 %v1356
        %v1480 = vunpack.c.h.b16 %v1356
        %v1481 = vunpack.c.l.b16 %v1357
        %v1482 = vpack.c.b16 %v1461, %v1458
        %v1483 = vpack.c.b16 %v1462, %v1459
        %v1484 = vpack.c.b16 %v1463, %v1460
        %v1485 = vpack.c.b16 %v1467, %v1464
        %v1486 = vpack.c.b16 %v1468, %v1465
        %v1487 = vpack.c.b16 %v1469, %v1466
        %v1488 = vpack.c.b16 %v1473, %v1470
        %v1489 = vpack.c.b16 %v1474, %v1471
        %v1490 = vpack.c.b16 %v1475, %v1472
        %v1491 = vpack.c.b16 %v1479, %v1476
        %v1492 = vpack.c.b16 %v1480, %v1477
        %v1493 = vpack.c.b16 %v1481, %v1478
        %v1503 = vsel %vm778, %v1484, 0
        %v1506 = vsel %vm778, %v1487, 0
        %v1509 = vsel %vm778, %v1490, 0
        %v1512 = vsel %vm778, %v1493, 0
        %1514 = vmatprep.subr.bf16.mxu0 %v1359
        %1515 = vmatpush1.bf16.msra.mxu0 %v1358
        %1516 = vmatprep.subr.bf16.mxu0 %v1361
        %1517 = vmatpush1.bf16.msra.mxu0 %v1360
        %1518 = vmatprep.subr.bf16.mxu0 %v1363
        %1519 = vmatpush1.bf16.msra.mxu0 %v1362
        %1520 = vmatprep.subr.bf16.mxu0 %v1365
        %1521 = vmatpush1.bf16.msra.mxu0 %v1364
        %1522 = vmatprep.subr.bf16.mxu0 %v1367
        %1523 = vmatpush1.bf16.msra.mxu0 %v1366
        %1524 = vmatprep.subr.bf16.mxu0 %v1369
        %1525 = vmatpush1.bf16.msra.mxu0 %v1368
        %1526 = vmatprep.subr.bf16.mxu0 %v1371
        %1527 = vmatpush1.bf16.msra.mxu0 %v1370
        %1528 = vmatprep.subr.bf16.mxu0 %v1373
        %1529 = vmatpush1.bf16.msra.mxu0 %v1372
        %1530 = vmatprep.subr.bf16.mxu0 %v1375
        %1531 = vmatpush1.bf16.msra.mxu0 %v1374
        %1532 = vmatprep.subr.bf16.mxu0 %v1377
        %1533 = vmatpush1.bf16.msra.mxu0 %v1376
        %1534 = vmatprep.subr.bf16.mxu0 %v1379
        %1535 = vmatpush1.bf16.msra.mxu0 %v1378
        %1536 = vmatprep.subr.bf16.mxu0 %v1381
        %1537 = vmatpush1.bf16.msra.mxu0 %v1380
        %1538 = vmatprep.subr.bf16.mxu0 %v1383
        %1539 = vmatpush1.bf16.msra.mxu0 %v1382
        %1540 = vmatprep.subr.bf16.mxu0 %v1385
        %1541 = vmatpush1.bf16.msra.mxu0 %v1384
        %1542 = vmatprep.subr.bf16.mxu0 %v1387
        %1543 = vmatpush1.bf16.msra.mxu0 %v1386
        %1544 = vmatprep.subr.bf16.mxu0 %v1389
        %1545 = vmatpush1.bf16.msra.mxu0 %v1388
        %1546 = vmatprep.mubr.bf16.mxu0 %v1483
        %1547 = vmatmul.mubr.bf16.gmra.mrb[0].mxu0 %v1482
        %v1548 = vpop.f32.mrb[0].mxu0
        %v1549 = vadd.f32 %v1405, %v1548
        %v1550 = vpop.f32.mrb[0].mxu0
        %v1551 = vadd.f32 %v1405, %v1550
        %v1552 = vpop.f32.mrb[0].mxu0
        %v1553 = vadd.f32 %v1410, %v1552
        %v1554 = vpop.f32.mrb[0].mxu0
        %v1555 = vadd.f32 %v1410, %v1554
        %1556 = vmatprep.mubr.bf16.mxu0 %v1486
        %1557 = vmatmul.mubr.bf16.gmra.mrb[0].mxu0 %v1485
        %v1558 = vpop.f32.mrb[0].mxu0
        %v1559 = vadd.f32 %v1415, %v1558
        %v1560 = vpop.f32.mrb[0].mxu0
        %v1561 = vadd.f32 %v1415, %v1560
        %v1562 = vpop.f32.mrb[0].mxu0
        %v1563 = vadd.f32 %v1420, %v1562
        %v1564 = vpop.f32.mrb[0].mxu0
        %v1565 = vadd.f32 %v1420, %v1564
        %1566 = vmatprep.mubr.bf16.mxu0 %v1489
        %1567 = vmatmul.mubr.bf16.gmra.mrb[0].mxu0 %v1488
        %v1568 = vpop.f32.mrb[0].mxu0
        %v1569 = vadd.f32 %v1425, %v1568
        %v1570 = vpop.f32.mrb[0].mxu0
        %v1571 = vadd.f32 %v1425, %v1570
        %v1572 = vpop.f32.mrb[0].mxu0
        %v1573 = vadd.f32 %v1430, %v1572
        %v1574 = vpop.f32.mrb[0].mxu0
        %v1575 = vadd.f32 %v1430, %v1574
        %1576 = vmatprep.mubr.bf16.mxu0 %v1492
        %1577 = vmatmul.mubr.bf16.gmra.mrb[0].mxu0 %v1491
        %v1578 = vpop.f32.mrb[0].mxu0
        %v1579 = vadd.f32 %v1435, %v1578
        %v1580 = vpop.f32.mrb[0].mxu0
        %v1581 = vadd.f32 %v1435, %v1580
        %v1582 = vpop.f32.mrb[0].mxu0
        %v1583 = vadd.f32 %v1440, %v1582
        %v1584 = vpop.f32.mrb[0].mxu0
        %v1585 = vadd.f32 %v1440, %v1584
        %1586 = vdwg.mxu0
        %1587 = vmatprep.subr.bf16.mxu0 %v1391
        %1588 = vmatpush1.bf16.msra.mxu0 %v1390
        %1589 = vmatprep.subr.bf16.mxu0 %v1393
        %1590 = vmatpush1.bf16.msra.mxu0 %v1392
        %1591 = vmatprep.subr.bf16.mxu0 0
        %1592 = vmatpush1.bf16.msra.mxu0 0
        %1593 = vmatprep.subr.bf16.mxu0 0
        %1594 = vmatpush1.bf16.msra.mxu0 0
        %1595 = vmatprep.subr.bf16.mxu0 0
        %1596 = vmatpush1.bf16.msra.mxu0 0
        %1597 = vmatprep.subr.bf16.mxu0 0
        %1598 = vmatpush1.bf16.msra.mxu0 0
        %1599 = vmatprep.subr.bf16.mxu0 0
        %1600 = vmatpush1.bf16.msra.mxu0 0
        %1601 = vmatprep.subr.bf16.mxu0 0
        %1602 = vmatpush1.bf16.msra.mxu0 0
        %1603 = vmatprep.subr.bf16.mxu0 0
        %1604 = vmatpush1.bf16.msra.mxu0 0
        %1605 = vmatprep.subr.bf16.mxu0 0
        %1606 = vmatpush1.bf16.msra.mxu0 0
        %1607 = vmatprep.subr.bf16.mxu0 0
        %1608 = vmatpush1.bf16.msra.mxu0 0
        %1609 = vmatprep.subr.bf16.mxu0 0
        %1610 = vmatpush1.bf16.msra.mxu0 0
        %1611 = vmatprep.subr.bf16.mxu0 0
        %1612 = vmatpush1.bf16.msra.mxu0 0
        %1613 = vmatprep.subr.bf16.mxu0 0
        %1614 = vmatpush1.bf16.msra.mxu0 0
        %1615 = vmatprep.subr.bf16.mxu0 0
        %1616 = vmatpush1.bf16.msra.mxu0 0
        %1617 = vmatprep.subr.bf16.mxu0 0
        %1618 = vmatpush1.bf16.msra.mxu0 0
        %1619 = vmatprep.mubr.bf16.mxu0 0
        %1620 = vmatmul.mubr.bf16.gmra.mrb[0].mxu0 %v1503
        %v1621 = vpop.f32.mrb[0].mxu0
        %v1622 = vadd.f32 %v1549, %v1621
        %v1623 = vpop.f32.mrb[0].mxu0
        %v1624 = vadd.f32 %v1551, %v1623
        %v1625 = vpop.f32.mrb[0].mxu0
        %v1626 = vadd.f32 %v1553, %v1625
        %v1627 = vpop.f32.mrb[0].mxu0
        %v1628 = vadd.f32 %v1555, %v1627
        %1629 = vmatprep.mubr.bf16.mxu0 0
        %1630 = vmatmul.mubr.bf16.gmra.mrb[0].mxu0 %v1506
        %v1631 = vpop.f32.mrb[0].mxu0
        %v1632 = vadd.f32 %v1559, %v1631
        %v1633 = vpop.f32.mrb[0].mxu0
        %v1634 = vadd.f32 %v1561, %v1633
        %v1635 = vpop.f32.mrb[0].mxu0
        %v1636 = vadd.f32 %v1563, %v1635
        %v1637 = vpop.f32.mrb[0].mxu0
        %v1638 = vadd.f32 %v1565, %v1637
        %1639 = vmatprep.mubr.bf16.mxu0 0
        %1640 = vmatmul.mubr.bf16.gmra.mrb[0].mxu0 %v1509
        %v1641 = vpop.f32.mrb[0].mxu0
        %v1642 = vadd.f32 %v1569, %v1641
        %v1643 = vpop.f32.mrb[0].mxu0
        %v1644 = vadd.f32 %v1571, %v1643
        %v1645 = vpop.f32.mrb[0].mxu0
        %v1646 = vadd.f32 %v1573, %v1645
        %v1647 = vpop.f32.mrb[0].mxu0
        %v1648 = vadd.f32 %v1575, %v1647
        %1649 = vmatprep.mubr.bf16.mxu0 0
        %1650 = vmatmul.mubr.bf16.gmra.mrb[0].mxu0 %v1512
        %v1651 = vpop.f32.mrb[0].mxu0
        %v1652 = vadd.f32 %v1579, %v1651
        %v1653 = vpop.f32.mrb[0].mxu0
        %v1654 = vadd.f32 %v1581, %v1653
        %v1655 = vpop.f32.mrb[0].mxu0
        %v1656 = vadd.f32 %v1583, %v1655
        %v1657 = vpop.f32.mrb[0].mxu0
        %v1658 = vadd.f32 %v1585, %v1657
        %1659 = vdwg.mxu0
        %v1660 = vxor.u32 %v1642, 2147483648
        %v1661 = vxor.u32 %v1644, 2147483648
        %v1662 = vxor.u32 %v1646, 2147483648
        %v1663 = vxor.u32 %v1648, 2147483648
        %v1664 = vxor.u32 %v1652, 2147483648
        %v1665 = vxor.u32 %v1654, 2147483648
        %v1666 = vxor.u32 %v1656, 2147483648
        %v1667 = vxor.u32 %v1658, 2147483648
        %v1668 = vmul.f32 %v1660, 1.442695
        %v1669 = vpow.pop %v1668
        %v1670 = vmul.f32 %v1661, 1.442695
        %v1671 = vpow.pop %v1670
        %v1672 = vmul.f32 %v1662, 1.442695
        %v1673 = vpow.pop %v1672
        %v1674 = vmul.f32 %v1663, 1.442695
        %v1675 = vpow.pop %v1674
        %v1676 = vmul.f32 %v1664, 1.442695
        %v1677 = vpow.pop %v1676
        %v1678 = vmul.f32 %v1665, 1.442695
        %v1679 = vpow.pop %v1678
        %v1680 = vmul.f32 %v1666, 1.442695
        %v1681 = vpow.pop %v1680
        %v1682 = vmul.f32 %v1667, 1.442695
        %v1683 = vpow.pop %v1682
        %v1684 = vadd.f32 %v1669, 1.0
        %v1685 = vadd.f32 %v1671, 1.0
        %v1686 = vadd.f32 %v1673, 1.0
        %v1687 = vadd.f32 %v1675, 1.0
        %v1688 = vadd.f32 %v1677, 1.0
        %v1689 = vadd.f32 %v1679, 1.0
        %v1690 = vadd.f32 %v1681, 1.0
        %v1691 = vadd.f32 %v1683, 1.0
        %v1692 = vrcp.pop %v1684
        %v1693 = vmul.f32 1.0, %v1692
        %v1694 = vrcp.pop %v1685
        %v1695 = vmul.f32 1.0, %v1694
        %v1696 = vrcp.pop %v1686
        %v1697 = vmul.f32 1.0, %v1696
        %v1698 = vrcp.pop %v1687
        %v1699 = vmul.f32 1.0, %v1698
        %v1700 = vrcp.pop %v1688
        %v1701 = vmul.f32 1.0, %v1700
        %v1702 = vrcp.pop %v1689
        %v1703 = vmul.f32 1.0, %v1702
        %v1704 = vrcp.pop %v1690
        %v1705 = vmul.f32 1.0, %v1704
        %v1706 = vrcp.pop %v1691
        %v1707 = vmul.f32 1.0, %v1706
        %v1708 = vmul.f32 %v1622, %v1693
        %v1709 = vmul.f32 %v1624, %v1695
        %v1710 = vmul.f32 %v1626, %v1697
        %v1711 = vmul.f32 %v1628, %v1699
        %v1712 = vmul.f32 %v1632, %v1701
        %v1713 = vmul.f32 %v1634, %v1703
        %v1714 = vmul.f32 %v1636, %v1705
        %v1715 = vmul.f32 %v1638, %v1707
        %v1716 = vld [vmem:[%s7] sm:$0x3]
        %v1717 = vpack.c.bf16 %v1710, %v1708
        %v1718 = vpack.c.bf16 %v1711, %v1709
        %v1719 = vpack.c.bf16 %v1714, %v1712
        %v1720 = vpack.c.bf16 %v1715, %v1713
        %v1721 = vld [vmem:[%s8] sm:$0xf]
        %1723 = vset.pattern.permute.xlu0 0
        %1724 = vperm.xlu0 %1723, %v1721
        %v1725 = vpop.permute.xlu0 %1724
        %v1728 = vsel %vm778, %v1716, 0
        %1730 = vmatprep.subr.bf16.mxu0 %v1718
        %1731 = vmatpush1.bf16.msra.mxu0 %v1717
        %1732 = vmatprep.subr.bf16.mxu0 %v1720
        %1733 = vmatpush1.bf16.msra.mxu0 %v1719
        %1734 = vmatprep.subr.bf16.mxu0 0
        %1735 = vmatpush1.bf16.msra.mxu0 0
        %1736 = vmatprep.subr.bf16.mxu0 0
        %1737 = vmatpush1.bf16.msra.mxu0 0
        %1738 = vmatprep.subr.bf16.mxu0 0
        %1739 = vmatpush1.bf16.msra.mxu0 0
        %1740 = vmatprep.subr.bf16.mxu0 0
        %1741 = vmatpush1.bf16.msra.mxu0 0
        %1742 = vmatprep.subr.bf16.mxu0 0
        %1743 = vmatpush1.bf16.msra.mxu0 0
        %1744 = vmatprep.subr.bf16.mxu0 0
        %1745 = vmatpush1.bf16.msra.mxu0 0
        %1746 = vmatprep.subr.bf16.mxu0 0
        %1747 = vmatpush1.bf16.msra.mxu0 0
        %1748 = vmatprep.subr.bf16.mxu0 0
        %1749 = vmatpush1.bf16.msra.mxu0 0
        %1750 = vmatprep.subr.bf16.mxu0 0
        %1751 = vmatpush1.bf16.msra.mxu0 0
        %1752 = vmatprep.subr.bf16.mxu0 0
        %1753 = vmatpush1.bf16.msra.mxu0 0
        %1754 = vmatprep.subr.bf16.mxu0 0
        %1755 = vmatpush1.bf16.msra.mxu0 0
        %1756 = vmatprep.subr.bf16.mxu0 0
        %1757 = vmatpush1.bf16.msra.mxu0 0
        %1758 = vmatprep.subr.bf16.mxu0 0
        %1759 = vmatpush1.bf16.msra.mxu0 0
        %1760 = vmatprep.subr.bf16.mxu0 0
        %1761 = vmatpush1.bf16.msra.mxu0 0
        %1762 = vmatprep.mubr.bf16.mxu0 0
        %1763 = vmatmul.mubr.bf16.gmra.mrb[0].mxu0 %v1728
        %v1764 = vpop.f32.mrb[0].mxu0
        %v1765 = vadd.f32 %v1725, %v1764
        %v1766 = vpop.f32.mrb[0].mxu0
        %v1767 = vadd.f32 %v1725, %v1766
        %v1768 = vpop.f32.mrb[0].mxu0
        %v1769 = vpop.f32.mrb[0].mxu0
        %1770 = vdwg.mxu0
        %v1771 = vtanh.pop %v1765
        %v1772 = vtanh.pop %v1767
        %v1775 = vcombine.low %v1771, %v1772
        %1777 = vst [vmem:[%s323] sm:$0xff] %v1775
        %s1778 = sand.u32 %s225, 1
        %s1779 = scalar_lea.sflag [#allocation4], %s1778
        %s1780 = sand.u32 %s225, 1
        %s1781 = smul.addr %s1780, 8
        %s1782 = scalar_lea.vmem [#allocation3], %s1781
        // Predicated region
        $region57: #{tpu_custom_call.1} parent=55 // pred_check
          %p1783 = pneg %p235
        $region58: #{tpu_custom_call.1} parent=55 // pred_check_branch
          %1785 = sbr.rel (%p1783) target = $region60
        $region59: #{tpu_custom_call.1} parent=55 // pred_region
          %s1787 = ssub.s32 128, 128
          %1788 = vsyncadd %s1779, %s1787
          %s1789 = smul.addr %s23, 2
          %s1790 = smul.addr %s1789, 64
          %s1791 = scalar_lea.hbm %s9, %s1790
          %s1793 = sshll.u32 %s1782, 4
          %s1794 = int_to_ptr.vmem [resolvable:$true] %s1793
          %1796 = dma.vmem_to_hbm [thread:$0]  %s1794, 128, %s1791, %s1779
        $region60: #{tpu_custom_call.1} parent=55 // pred_fallthru
          _
      $region56: #{tpu_custom_call.1} parent=5 // pred_fallthru
        _
      %p1797 = scmp.le.s32.totalorder 2, %s18
      // Predicated region
      $region61: #{tpu_custom_call.1} parent=5 // pred_check
        %p1798 = pneg %p1797
      $region62: #{tpu_custom_call.1} parent=5 // pred_check_branch
        %1800 = sbr.rel (%p1798) target = $region64
      $region63: #{tpu_custom_call.1} parent=5 // pred_region
        %s1801 = ssub.s32 %s18, 2
        // Predicated region
        $region65: #{tpu_custom_call.1} parent=63 // pred_check
          %p1802 = pneg %p241
        $region66: #{tpu_custom_call.1} parent=63 // pred_check_branch
          %1804 = sbr.rel (%p1802) target = $region68
        $region67: #{tpu_custom_call.1} parent=63 // pred_region
          %s1805 = sand.u32 %s226, 1
          %s1806 = scalar_lea.sflag [#allocation4], %s1805
          %s1807 = sand.u32 %s226, 1
          %s1808 = smul.addr %s1807, 8
          %s1809 = scalar_lea.vmem [#allocation3], %s1808
          %1810 = dma.done %s1806, 128
        $region68: #{tpu_custom_call.1} parent=63 // pred_fallthru
          _
      $region64: #{tpu_custom_call.1} parent=5 // pred_fallthru
        _
    $region6: #{tpu_custom_call.1} parent=1 // loop_footer
      %s22 = sadd.s32 1, %s18
    $region7: #{tpu_custom_call.1} parent=1 // loop_footer_branch
      %17 = sbr.rel target = $region3
    $region8: #{tpu_custom_call.1} parent=1 // loop_exit
      _
    %1811 = vsyncpa [#allocation4], 1
    %s1812 = scalar_lea.sflag [#allocation4], 1
    %1813 = vsyncpa %s1812, 1

</llo_original>
